<compile_context>
chip_gen: v7x
topology: tpu7x:2x2x1
jax: 0.10.0
libtpu: 0.0.40
codegen_flags: <defaults>
</compile_context>

<pallas_src>
import functools

import jax
import jax.numpy as jnp
from jax.experimental import pallas as pl
from jax.experimental.pallas import tpu as pltpu

# Model hyper-parameters (small; E == H required by tied embeddings feeding the GRU).
VOCAB = 64       # |V|
EMB = 32         # embedding_dim
HID = 32         # hidden_dim
LAYERS = 2       # gru_layers
SEQ = 8          # T packed tokens
GATES = 128      # lane-packed [r|z|n] width: 3*HID = 96, padded to one full vreg
NEG = -1e30      # "minus infinity" bias for padded vocab columns


def rnnlm_kernel(tok_ref, emb_ref, wg_ref, ug_ref, bg_ref, fcw_ref, fcb_ref,
                 out_ref, *, num_layers, seq_len, hidden):
    """GRU stack + Linear + log_softmax, fully in-kernel, everything vreg-resident."""
    L, T, H = num_layers, seq_len, hidden

    # ---- tied-embedding gather: T dynamic row reads of fc1.weight (VMEM) ----
    rows = [emb_ref[pl.ds(tok_ref[t], 1), :] for t in range(T)]     # each (1, H)
    x = jnp.concatenate(rows, axis=0)                               # (T, H)

    # ---- hoist all layer weights / biases (loaded once, outside the t-loop) ----
    W = [wg_ref[l] for l in range(L)]                               # (H, G) packed [r|z|n]
    U = [ug_ref[l] for l in range(L)]                               # (H, G)
    Bi = [bg_ref[l][0:1, :] for l in range(L)]                      # (1, G) input bias (bhh_r/z folded)
    Bn = [bg_ref[l][1:2, :] for l in range(L)]                      # (1, G) bhh_n in lanes 2H:3H

    # ---- layer-0 input projection for all time steps at once (one MXU pass) ----
    gi0 = jnp.dot(x, W[0], preferred_element_type=jnp.float32) + Bi[0]   # (T, G)

    def gru_cell(gi, h, u, bn):
        # gi: (1,G) packed input pre-activation; h: (1,H); u: (H,G); bn: (1,G)
        hu = jnp.dot(h, u, preferred_element_type=jnp.float32) + bn      # (1, G)
        pre = gi + hu
        sg = jax.nn.sigmoid(pre)                     # r @ lanes 0:H, z @ H:2H  (1 EUP push)
        r_al = pltpu.roll(sg, shift=2 * H, axis=1)   # XLU: align r with the n lane group
        nf = jnp.tanh(gi + r_al * hu)                # n @ lanes 2H:3H          (1 EUP push)
        z = sg[:, H:2 * H]
        n = nf[:, 2 * H:3 * H]
        return (1.0 - z) * n + z * h                 # (1, H)

    # ---- wavefront recurrence: time outer, layers inner.
    # layer l @ step t depends only on (l, t-1) and (l-1, t); the fully unrolled
    # DAG exposes layer-0 step t+1 concurrently with layer-1 step t.
    h = [jnp.zeros((1, H), jnp.float32) for _ in range(L)]
    tops = []
    for t in range(T):
        gi = gi0[t:t + 1, :]
        for l in range(L):
            if l > 0:   # per-step input projection from the layer below (keeps layers pipelined)
                gi = jnp.dot(h[l - 1], W[l], preferred_element_type=jnp.float32) + Bi[l]
            h[l] = gru_cell(gi, h[l], U[l], Bn[l])
        tops.append(h[L - 1])
    top = jnp.concatenate(tops, axis=0)                              # (T, H)

    # ---- output projection + numerically stable log_softmax.
    # Padded vocab columns carry a NEG bias, so exp() zeroes them and the
    # normalizer only sees real vocab entries.
    logits = jnp.dot(top, fcw_ref[...], preferred_element_type=jnp.float32) + fcb_ref[...]
    m = jnp.max(logits, axis=1, keepdims=True)
    zc = logits - m
    out_ref[...] = zc - jnp.log(jnp.sum(jnp.exp(zc), axis=1, keepdims=True))


def prepare_params(params):
    """One-time weight preprocessing (hoisted out of the forward path)."""
    fc1_w = params["fc1_w"].astype(jnp.float32)      # (V, H)
    fc1_b = params["fc1_b"].astype(jnp.float32)      # (1, V)
    wih, whh = params["wih"], params["whh"]          # (L, 3H, H), PyTorch [r|z|n] rows
    bih, bhh = params["bih"], params["bhh"]          # (L, 1, 3H)

    L, _, H = wih.shape
    V = fc1_w.shape[0]
    G = GATES
    assert 3 * H <= G

    def pack_w(w):   # (L, 3H, H) -> (L, H, G): columns [r | z | n | zero-pad], pre-transposed
        wt = jnp.transpose(w, (0, 2, 1)).astype(jnp.float32)        # (L, H, 3H)
        return jnp.pad(wt, ((0, 0), (0, 0), (0, G - 3 * H)))

    wg = pack_w(wih)
    ug = pack_w(whh)

    b_in = bih[:, 0, :].astype(jnp.float32)          # (L, 3H)
    b_hh = bhh[:, 0, :].astype(jnp.float32)
    # Fold bhh_r / bhh_z into the (parallel) input-projection bias; keep bhh_n
    # separate — PyTorch GRU applies it inside r * (Whh_n h + bhh_n).
    bi = jnp.concatenate([b_in[:, :H] + b_hh[:, :H],
                          b_in[:, H:2 * H] + b_hh[:, H:2 * H],
                          b_in[:, 2 * H:]], axis=1)                 # (L, 3H)
    bi = jnp.pad(bi, ((0, 0), (0, G - 3 * H)))                      # (L, G)
    bn = jnp.pad(b_hh[:, 2 * H:], ((0, 0), (2 * H, G - 3 * H)))     # (L, G): bhh_n @ lanes 2H:3H
    bg = jnp.stack([bi, bn], axis=1)                                # (L, 2, G)

    # Lane-dense output: pad V up to a multiple of 128. Padded weight columns are
    # zero and padded biases are NEG so those logits never affect the softmax.
    Vp = max(128, ((V + 127) // 128) * 128)
    fcw = jnp.zeros((H, Vp), jnp.float32).at[:, :V].set(fc1_w.T)
    fcb = jnp.full((1, Vp), NEG, jnp.float32).at[:, :V].set(fc1_b)

    return {"emb": fc1_w, "wg": wg, "ug": ug, "bg": bg, "fcw": fcw, "fcb": fcb,
            "vocab": V, "vocab_pad": Vp, "hidden": H, "layers": L}


def rnnlm_forward(tokens, prep):
    T = tokens.shape[0]
    smem = pl.BlockSpec(memory_space=pltpu.MemorySpace.SMEM)
    vmem = pl.BlockSpec(memory_space=pltpu.MemorySpace.VMEM)
    out_p = pl.pallas_call(
        functools.partial(rnnlm_kernel, num_layers=prep["layers"],
                          seq_len=T, hidden=prep["hidden"]),
        out_shape=jax.ShapeDtypeStruct((T, prep["vocab_pad"]), jnp.float32),
        in_specs=[smem] + [vmem] * 6,
        out_specs=vmem,
    )(tokens, prep["emb"], prep["wg"], prep["ug"], prep["bg"],
      prep["fcw"], prep["fcb"])
    return out_p[:, :prep["vocab"]]


def init_params(key):
    ks = jax.random.split(key, 6)
    s = 0.1
    return {
        "fc1_w": s * jax.random.normal(ks[0], (VOCAB, HID), jnp.float32),
        "fc1_b": s * jax.random.normal(ks[1], (1, VOCAB), jnp.float32),
        "wih": s * jax.random.normal(ks[2], (LAYERS, 3 * HID, HID), jnp.float32),
        "whh": s * jax.random.normal(ks[3], (LAYERS, 3 * HID, HID), jnp.float32),
        "bih": s * jax.random.normal(ks[4], (LAYERS, 1, 3 * HID), jnp.float32),
        "bhh": s * jax.random.normal(ks[5], (LAYERS, 1, 3 * HID), jnp.float32),
    }


def rnnlm_reference(tokens, params):
    """Pure-JAX reference mirroring torch.nn.GRU + Linear + log_softmax."""
    x = jnp.take(params["fc1_w"], tokens, axis=0)
    H = HID
    for layer in range(LAYERS):
        wih, whh = params["wih"][layer], params["whh"][layer]
        bih, bhh = params["bih"][layer][0], params["bhh"][layer][0]
        h = jnp.zeros((H,), jnp.float32)
        outs = []
        for t in range(x.shape[0]):
            gi = wih @ x[t] + bih
            gh = whh @ h + bhh
            r = jax.nn.sigmoid(gi[:H] + gh[:H])
            z = jax.nn.sigmoid(gi[H:2 * H] + gh[H:2 * H])
            n = jnp.tanh(gi[2 * H:] + r * gh[2 * H:])
            h = (1.0 - z) * n + z * h
            outs.append(h)
        x = jnp.stack(outs, axis=0)
    logits = x @ params["fc1_w"].T + params["fc1_b"][0]
    return jax.nn.log_softmax(logits, axis=1)


if __name__ == "__main__":
    key = jax.random.PRNGKey(0)
    pkey, tkey = jax.random.split(key)
    params = init_params(pkey)
    tokens = jax.random.randint(tkey, (SEQ,), 0, VOCAB, dtype=jnp.int32)

    prep = prepare_params(params)                       # one-time weight prep (not per call)
    out = jax.block_until_ready(rnnlm_forward(tokens, prep))
    ref = rnnlm_reference(tokens, params)

    assert out.shape == (SEQ, VOCAB)
    assert jnp.allclose(out, ref, atol=1e-4, rtol=1e-4), float(jnp.max(jnp.abs(out - ref)))
    print("KERNEL_OK")
</pallas_src>

<mosaic_0001>
module attributes {stable_mosaic.version = 11 : i64} {
  func.func @rnnlm_kernel(%arg0: memref<8xi32, #tpu.memory_space<smem>>, %arg1: memref<64x32xf32, #tpu.memory_space<vmem>>, %arg2: memref<2x32x128xf32, #tpu.memory_space<vmem>>, %arg3: memref<2x32x128xf32, #tpu.memory_space<vmem>>, %arg4: memref<2x2x128xf32, #tpu.memory_space<vmem>>, %arg5: memref<32x128xf32, #tpu.memory_space<vmem>>, %arg6: memref<1x128xf32, #tpu.memory_space<vmem>>, %arg7: memref<8x128xf32, #tpu.memory_space<vmem>>) attributes {dimension_semantics = [], scalar_prefetch = 0 : i64, scratch_operands = 0 : i64, tpu.core_type = #tpu.core_type<tc>} {
    %c0 = arith.constant 0 : index
    %0 = memref.load %arg0[%c0] : memref<8xi32, #tpu.memory_space<smem>>
    %1 = arith.index_cast %0 : i32 to index
    %c0_0 = arith.constant 0 : index
    %2 = vector.load %arg1[%1, %c0_0] : memref<64x32xf32, #tpu.memory_space<vmem>>, vector<1x32xf32>
    %c1 = arith.constant 1 : index
    %3 = memref.load %arg0[%c1] : memref<8xi32, #tpu.memory_space<smem>>
    %4 = arith.index_cast %3 : i32 to index
    %c0_1 = arith.constant 0 : index
    %5 = vector.load %arg1[%4, %c0_1] : memref<64x32xf32, #tpu.memory_space<vmem>>, vector<1x32xf32>
    %c2 = arith.constant 2 : index
    %6 = memref.load %arg0[%c2] : memref<8xi32, #tpu.memory_space<smem>>
    %7 = arith.index_cast %6 : i32 to index
    %c0_2 = arith.constant 0 : index
    %8 = vector.load %arg1[%7, %c0_2] : memref<64x32xf32, #tpu.memory_space<vmem>>, vector<1x32xf32>
    %c3 = arith.constant 3 : index
    %9 = memref.load %arg0[%c3] : memref<8xi32, #tpu.memory_space<smem>>
    %10 = arith.index_cast %9 : i32 to index
    %c0_3 = arith.constant 0 : index
    %11 = vector.load %arg1[%10, %c0_3] : memref<64x32xf32, #tpu.memory_space<vmem>>, vector<1x32xf32>
    %c4 = arith.constant 4 : index
    %12 = memref.load %arg0[%c4] : memref<8xi32, #tpu.memory_space<smem>>
    %13 = arith.index_cast %12 : i32 to index
    %c0_4 = arith.constant 0 : index
    %14 = vector.load %arg1[%13, %c0_4] : memref<64x32xf32, #tpu.memory_space<vmem>>, vector<1x32xf32>
    %c5 = arith.constant 5 : index
    %15 = memref.load %arg0[%c5] : memref<8xi32, #tpu.memory_space<smem>>
    %16 = arith.index_cast %15 : i32 to index
    %c0_5 = arith.constant 0 : index
    %17 = vector.load %arg1[%16, %c0_5] : memref<64x32xf32, #tpu.memory_space<vmem>>, vector<1x32xf32>
    %c6 = arith.constant 6 : index
    %18 = memref.load %arg0[%c6] : memref<8xi32, #tpu.memory_space<smem>>
    %19 = arith.index_cast %18 : i32 to index
    %c0_6 = arith.constant 0 : index
    %20 = vector.load %arg1[%19, %c0_6] : memref<64x32xf32, #tpu.memory_space<vmem>>, vector<1x32xf32>
    %c7 = arith.constant 7 : index
    %21 = memref.load %arg0[%c7] : memref<8xi32, #tpu.memory_space<smem>>
    %22 = arith.index_cast %21 : i32 to index
    %c0_7 = arith.constant 0 : index
    %23 = vector.load %arg1[%22, %c0_7] : memref<64x32xf32, #tpu.memory_space<vmem>>, vector<1x32xf32>
    %24 = tpu.concatenate %2, %5, %8, %11, %14, %17, %20, %23 in 0 : vector<1x32xf32>, vector<1x32xf32>, vector<1x32xf32>, vector<1x32xf32>, vector<1x32xf32>, vector<1x32xf32>, vector<1x32xf32>, vector<1x32xf32> -> vector<8x32xf32>
    %c0_8 = arith.constant 0 : index
    %c0_9 = arith.constant 0 : index
    %c0_10 = arith.constant 0 : index
    %25 = vector.load %arg2[%c0_8, %c0_9, %c0_10] : memref<2x32x128xf32, #tpu.memory_space<vmem>>, vector<1x32x128xf32>
    %26 = vector.shape_cast %25 : vector<1x32x128xf32> to vector<32x128xf32>
    %c1_11 = arith.constant 1 : index
    %c0_12 = arith.constant 0 : index
    %c0_13 = arith.constant 0 : index
    %27 = vector.load %arg2[%c1_11, %c0_12, %c0_13] : memref<2x32x128xf32, #tpu.memory_space<vmem>>, vector<1x32x128xf32>
    %28 = vector.shape_cast %27 : vector<1x32x128xf32> to vector<32x128xf32>
    %c0_14 = arith.constant 0 : index
    %c0_15 = arith.constant 0 : index
    %c0_16 = arith.constant 0 : index
    %29 = vector.load %arg3[%c0_14, %c0_15, %c0_16] : memref<2x32x128xf32, #tpu.memory_space<vmem>>, vector<1x32x128xf32>
    %30 = vector.shape_cast %29 : vector<1x32x128xf32> to vector<32x128xf32>
    %c1_17 = arith.constant 1 : index
    %c0_18 = arith.constant 0 : index
    %c0_19 = arith.constant 0 : index
    %31 = vector.load %arg3[%c1_17, %c0_18, %c0_19] : memref<2x32x128xf32, #tpu.memory_space<vmem>>, vector<1x32x128xf32>
    %32 = vector.shape_cast %31 : vector<1x32x128xf32> to vector<32x128xf32>
    %c0_20 = arith.constant 0 : index
    %c0_21 = arith.constant 0 : index
    %c0_22 = arith.constant 0 : index
    %33 = vector.load %arg4[%c0_20, %c0_21, %c0_22] : memref<2x2x128xf32, #tpu.memory_space<vmem>>, vector<1x2x128xf32>
    %34 = vector.shape_cast %33 : vector<1x2x128xf32> to vector<2x128xf32>
    %35 = vector.extract_strided_slice %34 {offsets = [0, 0], sizes = [1, 128], strides = [1, 1]} : vector<2x128xf32> to vector<1x128xf32>
    %c1_23 = arith.constant 1 : index
    %c0_24 = arith.constant 0 : index
    %c0_25 = arith.constant 0 : index
    %36 = vector.load %arg4[%c1_23, %c0_24, %c0_25] : memref<2x2x128xf32, #tpu.memory_space<vmem>>, vector<1x2x128xf32>
    %37 = vector.shape_cast %36 : vector<1x2x128xf32> to vector<2x128xf32>
    %38 = vector.extract_strided_slice %37 {offsets = [0, 0], sizes = [1, 128], strides = [1, 1]} : vector<2x128xf32> to vector<1x128xf32>
    %c0_26 = arith.constant 0 : index
    %c0_27 = arith.constant 0 : index
    %c0_28 = arith.constant 0 : index
    %39 = vector.load %arg4[%c0_26, %c0_27, %c0_28] : memref<2x2x128xf32, #tpu.memory_space<vmem>>, vector<1x2x128xf32>
    %40 = vector.shape_cast %39 : vector<1x2x128xf32> to vector<2x128xf32>
    %41 = vector.extract_strided_slice %40 {offsets = [1, 0], sizes = [1, 128], strides = [1, 1]} : vector<2x128xf32> to vector<1x128xf32>
    %c1_29 = arith.constant 1 : index
    %c0_30 = arith.constant 0 : index
    %c0_31 = arith.constant 0 : index
    %42 = vector.load %arg4[%c1_29, %c0_30, %c0_31] : memref<2x2x128xf32, #tpu.memory_space<vmem>>, vector<1x2x128xf32>
    %43 = vector.shape_cast %42 : vector<1x2x128xf32> to vector<2x128xf32>
    %44 = vector.extract_strided_slice %43 {offsets = [1, 0], sizes = [1, 128], strides = [1, 1]} : vector<2x128xf32> to vector<1x128xf32>
    %cst = arith.constant dense<0.000000e+00> : vector<8x128xf32>
    %45 = tpu.matmul %24, %26, %cst {dimension_numbers = #tpu.dot_dimension_numbers<[1], [0], [0], [1], [0, 0, 1, 1], [], []>} : vector<8x32xf32>, vector<32x128xf32>, vector<8x128xf32> -> vector<8x128xf32>
    %46 = vector.broadcast %35 : vector<1x128xf32> to vector<8x128xf32>
    %47 = arith.addf %45, %46 : vector<8x128xf32>
    %cst_32 = arith.constant 0.000000e+00 : f32
    %48 = vector.broadcast %cst_32 : f32 to vector<1x32xf32>
    %cst_33 = arith.constant 0.000000e+00 : f32
    %49 = vector.broadcast %cst_33 : f32 to vector<1x32xf32>
    %50 = vector.extract_strided_slice %47 {offsets = [0, 0], sizes = [1, 128], strides = [1, 1]} : vector<8x128xf32> to vector<1x128xf32>
    %cst_34 = arith.constant dense<0.000000e+00> : vector<1x128xf32>
    %51 = tpu.matmul %48, %30, %cst_34 {dimension_numbers = #tpu.dot_dimension_numbers<[1], [0], [0], [1], [0, 0, 1, 1], [], []>} : vector<1x32xf32>, vector<32x128xf32>, vector<1x128xf32> -> vector<1x128xf32>
    %52 = arith.addf %51, %41 : vector<1x128xf32>
    %53 = arith.addf %50, %52 : vector<1x128xf32>
    %54 = arith.negf %53 : vector<1x128xf32>
    %55 = math.exp %54 : vector<1x128xf32>
    %cst_35 = arith.constant 1.000000e+00 : f32
    %56 = vector.broadcast %cst_35 : f32 to vector<1x128xf32>
    %57 = arith.addf %56, %55 : vector<1x128xf32>
    %58 = arith.divf %56, %57 : vector<1x128xf32>
    %c64_i32 = arith.constant 64 : i32
    %59 = tpu.dynamic_rotate %58 by %c64_i32 dim 1 : vector<1x128xf32>, i32 -> vector<1x128xf32>
    %60 = arith.mulf %59, %52 : vector<1x128xf32>
    %61 = arith.addf %50, %60 : vector<1x128xf32>
    %62 = math.tanh %61 : vector<1x128xf32>
    %63 = vector.extract_strided_slice %58 {offsets = [0, 32], sizes = [1, 32], strides = [1, 1]} : vector<1x128xf32> to vector<1x32xf32>
    %64 = vector.extract_strided_slice %62 {offsets = [0, 64], sizes = [1, 32], strides = [1, 1]} : vector<1x128xf32> to vector<1x32xf32>
    %cst_36 = arith.constant 1.000000e+00 : f32
    %65 = vector.broadcast %cst_36 : f32 to vector<1x32xf32>
    %66 = arith.subf %65, %63 : vector<1x32xf32>
    %67 = arith.mulf %66, %64 : vector<1x32xf32>
    %68 = arith.mulf %63, %48 : vector<1x32xf32>
    %69 = arith.addf %67, %68 : vector<1x32xf32>
    %cst_37 = arith.constant dense<0.000000e+00> : vector<1x128xf32>
    %70 = tpu.matmul %69, %28, %cst_37 {dimension_numbers = #tpu.dot_dimension_numbers<[1], [0], [0], [1], [0, 0, 1, 1], [], []>} : vector<1x32xf32>, vector<32x128xf32>, vector<1x128xf32> -> vector<1x128xf32>
    %71 = arith.addf %70, %38 : vector<1x128xf32>
    %cst_38 = arith.constant dense<0.000000e+00> : vector<1x128xf32>
    %72 = tpu.matmul %49, %32, %cst_38 {dimension_numbers = #tpu.dot_dimension_numbers<[1], [0], [0], [1], [0, 0, 1, 1], [], []>} : vector<1x32xf32>, vector<32x128xf32>, vector<1x128xf32> -> vector<1x128xf32>
    %73 = arith.addf %72, %44 : vector<1x128xf32>
    %74 = arith.addf %71, %73 : vector<1x128xf32>
    %75 = arith.negf %74 : vector<1x128xf32>
    %76 = math.exp %75 : vector<1x128xf32>
    %cst_39 = arith.constant 1.000000e+00 : f32
    %77 = vector.broadcast %cst_39 : f32 to vector<1x128xf32>
    %78 = arith.addf %77, %76 : vector<1x128xf32>
    %79 = arith.divf %77, %78 : vector<1x128xf32>
    %c64_i32_40 = arith.constant 64 : i32
    %80 = tpu.dynamic_rotate %79 by %c64_i32_40 dim 1 : vector<1x128xf32>, i32 -> vector<1x128xf32>
    %81 = arith.mulf %80, %73 : vector<1x128xf32>
    %82 = arith.addf %71, %81 : vector<1x128xf32>
    %83 = math.tanh %82 : vector<1x128xf32>
    %84 = vector.extract_strided_slice %79 {offsets = [0, 32], sizes = [1, 32], strides = [1, 1]} : vector<1x128xf32> to vector<1x32xf32>
    %85 = vector.extract_strided_slice %83 {offsets = [0, 64], sizes = [1, 32], strides = [1, 1]} : vector<1x128xf32> to vector<1x32xf32>
    %cst_41 = arith.constant 1.000000e+00 : f32
    %86 = vector.broadcast %cst_41 : f32 to vector<1x32xf32>
    %87 = arith.subf %86, %84 : vector<1x32xf32>
    %88 = arith.mulf %87, %85 : vector<1x32xf32>
    %89 = arith.mulf %84, %49 : vector<1x32xf32>
    %90 = arith.addf %88, %89 : vector<1x32xf32>
    %91 = vector.extract_strided_slice %47 {offsets = [1, 0], sizes = [1, 128], strides = [1, 1]} : vector<8x128xf32> to vector<1x128xf32>
    %cst_42 = arith.constant dense<0.000000e+00> : vector<1x128xf32>
    %92 = tpu.matmul %69, %30, %cst_42 {dimension_numbers = #tpu.dot_dimension_numbers<[1], [0], [0], [1], [0, 0, 1, 1], [], []>} : vector<1x32xf32>, vector<32x128xf32>, vector<1x128xf32> -> vector<1x128xf32>
    %93 = arith.addf %92, %41 : vector<1x128xf32>
    %94 = arith.addf %91, %93 : vector<1x128xf32>
    %95 = arith.negf %94 : vector<1x128xf32>
    %96 = math.exp %95 : vector<1x128xf32>
    %cst_43 = arith.constant 1.000000e+00 : f32
    %97 = vector.broadcast %cst_43 : f32 to vector<1x128xf32>
    %98 = arith.addf %97, %96 : vector<1x128xf32>
    %99 = arith.divf %97, %98 : vector<1x128xf32>
    %c64_i32_44 = arith.constant 64 : i32
    %100 = tpu.dynamic_rotate %99 by %c64_i32_44 dim 1 : vector<1x128xf32>, i32 -> vector<1x128xf32>
    %101 = arith.mulf %100, %93 : vector<1x128xf32>
    %102 = arith.addf %91, %101 : vector<1x128xf32>
    %103 = math.tanh %102 : vector<1x128xf32>
    %104 = vector.extract_strided_slice %99 {offsets = [0, 32], sizes = [1, 32], strides = [1, 1]} : vector<1x128xf32> to vector<1x32xf32>
    %105 = vector.extract_strided_slice %103 {offsets = [0, 64], sizes = [1, 32], strides = [1, 1]} : vector<1x128xf32> to vector<1x32xf32>
    %cst_45 = arith.constant 1.000000e+00 : f32
    %106 = vector.broadcast %cst_45 : f32 to vector<1x32xf32>
    %107 = arith.subf %106, %104 : vector<1x32xf32>
    %108 = arith.mulf %107, %105 : vector<1x32xf32>
    %109 = arith.mulf %104, %69 : vector<1x32xf32>
    %110 = arith.addf %108, %109 : vector<1x32xf32>
    %cst_46 = arith.constant dense<0.000000e+00> : vector<1x128xf32>
    %111 = tpu.matmul %110, %28, %cst_46 {dimension_numbers = #tpu.dot_dimension_numbers<[1], [0], [0], [1], [0, 0, 1, 1], [], []>} : vector<1x32xf32>, vector<32x128xf32>, vector<1x128xf32> -> vector<1x128xf32>
    %112 = arith.addf %111, %38 : vector<1x128xf32>
    %cst_47 = arith.constant dense<0.000000e+00> : vector<1x128xf32>
    %113 = tpu.matmul %90, %32, %cst_47 {dimension_numbers = #tpu.dot_dimension_numbers<[1], [0], [0], [1], [0, 0, 1, 1], [], []>} : vector<1x32xf32>, vector<32x128xf32>, vector<1x128xf32> -> vector<1x128xf32>
    %114 = arith.addf %113, %44 : vector<1x128xf32>
    %115 = arith.addf %112, %114 : vector<1x128xf32>
    %116 = arith.negf %115 : vector<1x128xf32>
    %117 = math.exp %116 : vector<1x128xf32>
    %cst_48 = arith.constant 1.000000e+00 : f32
    %118 = vector.broadcast %cst_48 : f32 to vector<1x128xf32>
    %119 = arith.addf %118, %117 : vector<1x128xf32>
    %120 = arith.divf %118, %119 : vector<1x128xf32>
    %c64_i32_49 = arith.constant 64 : i32
    %121 = tpu.dynamic_rotate %120 by %c64_i32_49 dim 1 : vector<1x128xf32>, i32 -> vector<1x128xf32>
    %122 = arith.mulf %121, %114 : vector<1x128xf32>
    %123 = arith.addf %112, %122 : vector<1x128xf32>
    %124 = math.tanh %123 : vector<1x128xf32>
    %125 = vector.extract_strided_slice %120 {offsets = [0, 32], sizes = [1, 32], strides = [1, 1]} : vector<1x128xf32> to vector<1x32xf32>
    %126 = vector.extract_strided_slice %124 {offsets = [0, 64], sizes = [1, 32], strides = [1, 1]} : vector<1x128xf32> to vector<1x32xf32>
    %cst_50 = arith.constant 1.000000e+00 : f32
    %127 = vector.broadcast %cst_50 : f32 to vector<1x32xf32>
    %128 = arith.subf %127, %125 : vector<1x32xf32>
    %129 = arith.mulf %128, %126 : vector<1x32xf32>
    %130 = arith.mulf %125, %90 : vector<1x32xf32>
    %131 = arith.addf %129, %130 : vector<1x32xf32>
    %132 = vector.extract_strided_slice %47 {offsets = [2, 0], sizes = [1, 128], strides = [1, 1]} : vector<8x128xf32> to vector<1x128xf32>
    %cst_51 = arith.constant dense<0.000000e+00> : vector<1x128xf32>
    %133 = tpu.matmul %110, %30, %cst_51 {dimension_numbers = #tpu.dot_dimension_numbers<[1], [0], [0], [1], [0, 0, 1, 1], [], []>} : vector<1x32xf32>, vector<32x128xf32>, vector<1x128xf32> -> vector<1x128xf32>
    %134 = arith.addf %133, %41 : vector<1x128xf32>
    %135 = arith.addf %132, %134 : vector<1x128xf32>
    %136 = arith.negf %135 : vector<1x128xf32>
    %137 = math.exp %136 : vector<1x128xf32>
    %cst_52 = arith.constant 1.000000e+00 : f32
    %138 = vector.broadcast %cst_52 : f32 to vector<1x128xf32>
    %139 = arith.addf %138, %137 : vector<1x128xf32>
    %140 = arith.divf %138, %139 : vector<1x128xf32>
    %c64_i32_53 = arith.constant 64 : i32
    %141 = tpu.dynamic_rotate %140 by %c64_i32_53 dim 1 : vector<1x128xf32>, i32 -> vector<1x128xf32>
    %142 = arith.mulf %141, %134 : vector<1x128xf32>
    %143 = arith.addf %132, %142 : vector<1x128xf32>
    %144 = math.tanh %143 : vector<1x128xf32>
    %145 = vector.extract_strided_slice %140 {offsets = [0, 32], sizes = [1, 32], strides = [1, 1]} : vector<1x128xf32> to vector<1x32xf32>
    %146 = vector.extract_strided_slice %144 {offsets = [0, 64], sizes = [1, 32], strides = [1, 1]} : vector<1x128xf32> to vector<1x32xf32>
    %cst_54 = arith.constant 1.000000e+00 : f32
    %147 = vector.broadcast %cst_54 : f32 to vector<1x32xf32>
    %148 = arith.subf %147, %145 : vector<1x32xf32>
    %149 = arith.mulf %148, %146 : vector<1x32xf32>
    %150 = arith.mulf %145, %110 : vector<1x32xf32>
    %151 = arith.addf %149, %150 : vector<1x32xf32>
    %cst_55 = arith.constant dense<0.000000e+00> : vector<1x128xf32>
    %152 = tpu.matmul %151, %28, %cst_55 {dimension_numbers = #tpu.dot_dimension_numbers<[1], [0], [0], [1], [0, 0, 1, 1], [], []>} : vector<1x32xf32>, vector<32x128xf32>, vector<1x128xf32> -> vector<1x128xf32>
    %153 = arith.addf %152, %38 : vector<1x128xf32>
    %cst_56 = arith.constant dense<0.000000e+00> : vector<1x128xf32>
    %154 = tpu.matmul %131, %32, %cst_56 {dimension_numbers = #tpu.dot_dimension_numbers<[1], [0], [0], [1], [0, 0, 1, 1], [], []>} : vector<1x32xf32>, vector<32x128xf32>, vector<1x128xf32> -> vector<1x128xf32>
    %155 = arith.addf %154, %44 : vector<1x128xf32>
    %156 = arith.addf %153, %155 : vector<1x128xf32>
    %157 = arith.negf %156 : vector<1x128xf32>
    %158 = math.exp %157 : vector<1x128xf32>
    %cst_57 = arith.constant 1.000000e+00 : f32
    %159 = vector.broadcast %cst_57 : f32 to vector<1x128xf32>
    %160 = arith.addf %159, %158 : vector<1x128xf32>
    %161 = arith.divf %159, %160 : vector<1x128xf32>
    %c64_i32_58 = arith.constant 64 : i32
    %162 = tpu.dynamic_rotate %161 by %c64_i32_58 dim 1 : vector<1x128xf32>, i32 -> vector<1x128xf32>
    %163 = arith.mulf %162, %155 : vector<1x128xf32>
    %164 = arith.addf %153, %163 : vector<1x128xf32>
    %165 = math.tanh %164 : vector<1x128xf32>
    %166 = vector.extract_strided_slice %161 {offsets = [0, 32], sizes = [1, 32], strides = [1, 1]} : vector<1x128xf32> to vector<1x32xf32>
    %167 = vector.extract_strided_slice %165 {offsets = [0, 64], sizes = [1, 32], strides = [1, 1]} : vector<1x128xf32> to vector<1x32xf32>
    %cst_59 = arith.constant 1.000000e+00 : f32
    %168 = vector.broadcast %cst_59 : f32 to vector<1x32xf32>
    %169 = arith.subf %168, %166 : vector<1x32xf32>
    %170 = arith.mulf %169, %167 : vector<1x32xf32>
    %171 = arith.mulf %166, %131 : vector<1x32xf32>
    %172 = arith.addf %170, %171 : vector<1x32xf32>
    %173 = vector.extract_strided_slice %47 {offsets = [3, 0], sizes = [1, 128], strides = [1, 1]} : vector<8x128xf32> to vector<1x128xf32>
    %cst_60 = arith.constant dense<0.000000e+00> : vector<1x128xf32>
    %174 = tpu.matmul %151, %30, %cst_60 {dimension_numbers = #tpu.dot_dimension_numbers<[1], [0], [0], [1], [0, 0, 1, 1], [], []>} : vector<1x32xf32>, vector<32x128xf32>, vector<1x128xf32> -> vector<1x128xf32>
    %175 = arith.addf %174, %41 : vector<1x128xf32>
    %176 = arith.addf %173, %175 : vector<1x128xf32>
    %177 = arith.negf %176 : vector<1x128xf32>
    %178 = math.exp %177 : vector<1x128xf32>
    %cst_61 = arith.constant 1.000000e+00 : f32
    %179 = vector.broadcast %cst_61 : f32 to vector<1x128xf32>
    %180 = arith.addf %179, %178 : vector<1x128xf32>
    %181 = arith.divf %179, %180 : vector<1x128xf32>
    %c64_i32_62 = arith.constant 64 : i32
    %182 = tpu.dynamic_rotate %181 by %c64_i32_62 dim 1 : vector<1x128xf32>, i32 -> vector<1x128xf32>
    %183 = arith.mulf %182, %175 : vector<1x128xf32>
    %184 = arith.addf %173, %183 : vector<1x128xf32>
    %185 = math.tanh %184 : vector<1x128xf32>
    %186 = vector.extract_strided_slice %181 {offsets = [0, 32], sizes = [1, 32], strides = [1, 1]} : vector<1x128xf32> to vector<1x32xf32>
    %187 = vector.extract_strided_slice %185 {offsets = [0, 64], sizes = [1, 32], strides = [1, 1]} : vector<1x128xf32> to vector<1x32xf32>
    %cst_63 = arith.constant 1.000000e+00 : f32
    %188 = vector.broadcast %cst_63 : f32 to vector<1x32xf32>
    %189 = arith.subf %188, %186 : vector<1x32xf32>
    %190 = arith.mulf %189, %187 : vector<1x32xf32>
    %191 = arith.mulf %186, %151 : vector<1x32xf32>
    %192 = arith.addf %190, %191 : vector<1x32xf32>
    %cst_64 = arith.constant dense<0.000000e+00> : vector<1x128xf32>
    %193 = tpu.matmul %192, %28, %cst_64 {dimension_numbers = #tpu.dot_dimension_numbers<[1], [0], [0], [1], [0, 0, 1, 1], [], []>} : vector<1x32xf32>, vector<32x128xf32>, vector<1x128xf32> -> vector<1x128xf32>
    %194 = arith.addf %193, %38 : vector<1x128xf32>
    %cst_65 = arith.constant dense<0.000000e+00> : vector<1x128xf32>
    %195 = tpu.matmul %172, %32, %cst_65 {dimension_numbers = #tpu.dot_dimension_numbers<[1], [0], [0], [1], [0, 0, 1, 1], [], []>} : vector<1x32xf32>, vector<32x128xf32>, vector<1x128xf32> -> vector<1x128xf32>
    %196 = arith.addf %195, %44 : vector<1x128xf32>
    %197 = arith.addf %194, %196 : vector<1x128xf32>
    %198 = arith.negf %197 : vector<1x128xf32>
    %199 = math.exp %198 : vector<1x128xf32>
    %cst_66 = arith.constant 1.000000e+00 : f32
    %200 = vector.broadcast %cst_66 : f32 to vector<1x128xf32>
    %201 = arith.addf %200, %199 : vector<1x128xf32>
    %202 = arith.divf %200, %201 : vector<1x128xf32>
    %c64_i32_67 = arith.constant 64 : i32
    %203 = tpu.dynamic_rotate %202 by %c64_i32_67 dim 1 : vector<1x128xf32>, i32 -> vector<1x128xf32>
    %204 = arith.mulf %203, %196 : vector<1x128xf32>
    %205 = arith.addf %194, %204 : vector<1x128xf32>
    %206 = math.tanh %205 : vector<1x128xf32>
    %207 = vector.extract_strided_slice %202 {offsets = [0, 32], sizes = [1, 32], strides = [1, 1]} : vector<1x128xf32> to vector<1x32xf32>
    %208 = vector.extract_strided_slice %206 {offsets = [0, 64], sizes = [1, 32], strides = [1, 1]} : vector<1x128xf32> to vector<1x32xf32>
    %cst_68 = arith.constant 1.000000e+00 : f32
    %209 = vector.broadcast %cst_68 : f32 to vector<1x32xf32>
    %210 = arith.subf %209, %207 : vector<1x32xf32>
    %211 = arith.mulf %210, %208 : vector<1x32xf32>
    %212 = arith.mulf %207, %172 : vector<1x32xf32>
    %213 = arith.addf %211, %212 : vector<1x32xf32>
    %214 = vector.extract_strided_slice %47 {offsets = [4, 0], sizes = [1, 128], strides = [1, 1]} : vector<8x128xf32> to vector<1x128xf32>
    %cst_69 = arith.constant dense<0.000000e+00> : vector<1x128xf32>
    %215 = tpu.matmul %192, %30, %cst_69 {dimension_numbers = #tpu.dot_dimension_numbers<[1], [0], [0], [1], [0, 0, 1, 1], [], []>} : vector<1x32xf32>, vector<32x128xf32>, vector<1x128xf32> -> vector<1x128xf32>
    %216 = arith.addf %215, %41 : vector<1x128xf32>
    %217 = arith.addf %214, %216 : vector<1x128xf32>
    %218 = arith.negf %217 : vector<1x128xf32>
    %219 = math.exp %218 : vector<1x128xf32>
    %cst_70 = arith.constant 1.000000e+00 : f32
    %220 = vector.broadcast %cst_70 : f32 to vector<1x128xf32>
    %221 = arith.addf %220, %219 : vector<1x128xf32>
    %222 = arith.divf %220, %221 : vector<1x128xf32>
    %c64_i32_71 = arith.constant 64 : i32
    %223 = tpu.dynamic_rotate %222 by %c64_i32_71 dim 1 : vector<1x128xf32>, i32 -> vector<1x128xf32>
    %224 = arith.mulf %223, %216 : vector<1x128xf32>
    %225 = arith.addf %214, %224 : vector<1x128xf32>
    %226 = math.tanh %225 : vector<1x128xf32>
    %227 = vector.extract_strided_slice %222 {offsets = [0, 32], sizes = [1, 32], strides = [1, 1]} : vector<1x128xf32> to vector<1x32xf32>
    %228 = vector.extract_strided_slice %226 {offsets = [0, 64], sizes = [1, 32], strides = [1, 1]} : vector<1x128xf32> to vector<1x32xf32>
    %cst_72 = arith.constant 1.000000e+00 : f32
    %229 = vector.broadcast %cst_72 : f32 to vector<1x32xf32>
    %230 = arith.subf %229, %227 : vector<1x32xf32>
    %231 = arith.mulf %230, %228 : vector<1x32xf32>
    %232 = arith.mulf %227, %192 : vector<1x32xf32>
    %233 = arith.addf %231, %232 : vector<1x32xf32>
    %cst_73 = arith.constant dense<0.000000e+00> : vector<1x128xf32>
    %234 = tpu.matmul %233, %28, %cst_73 {dimension_numbers = #tpu.dot_dimension_numbers<[1], [0], [0], [1], [0, 0, 1, 1], [], []>} : vector<1x32xf32>, vector<32x128xf32>, vector<1x128xf32> -> vector<1x128xf32>
    %235 = arith.addf %234, %38 : vector<1x128xf32>
    %cst_74 = arith.constant dense<0.000000e+00> : vector<1x128xf32>
    %236 = tpu.matmul %213, %32, %cst_74 {dimension_numbers = #tpu.dot_dimension_numbers<[1], [0], [0], [1], [0, 0, 1, 1], [], []>} : vector<1x32xf32>, vector<32x128xf32>, vector<1x128xf32> -> vector<1x128xf32>
    %237 = arith.addf %236, %44 : vector<1x128xf32>
    %238 = arith.addf %235, %237 : vector<1x128xf32>
    %239 = arith.negf %238 : vector<1x128xf32>
    %240 = math.exp %239 : vector<1x128xf32>
    %cst_75 = arith.constant 1.000000e+00 : f32
    %241 = vector.broadcast %cst_75 : f32 to vector<1x128xf32>
    %242 = arith.addf %241, %240 : vector<1x128xf32>
    %243 = arith.divf %241, %242 : vector<1x128xf32>
    %c64_i32_76 = arith.constant 64 : i32
    %244 = tpu.dynamic_rotate %243 by %c64_i32_76 dim 1 : vector<1x128xf32>, i32 -> vector<1x128xf32>
    %245 = arith.mulf %244, %237 : vector<1x128xf32>
    %246 = arith.addf %235, %245 : vector<1x128xf32>
    %247 = math.tanh %246 : vector<1x128xf32>
    %248 = vector.extract_strided_slice %243 {offsets = [0, 32], sizes = [1, 32], strides = [1, 1]} : vector<1x128xf32> to vector<1x32xf32>
    %249 = vector.extract_strided_slice %247 {offsets = [0, 64], sizes = [1, 32], strides = [1, 1]} : vector<1x128xf32> to vector<1x32xf32>
    %cst_77 = arith.constant 1.000000e+00 : f32
    %250 = vector.broadcast %cst_77 : f32 to vector<1x32xf32>
    %251 = arith.subf %250, %248 : vector<1x32xf32>
    %252 = arith.mulf %251, %249 : vector<1x32xf32>
    %253 = arith.mulf %248, %213 : vector<1x32xf32>
    %254 = arith.addf %252, %253 : vector<1x32xf32>
    %255 = vector.extract_strided_slice %47 {offsets = [5, 0], sizes = [1, 128], strides = [1, 1]} : vector<8x128xf32> to vector<1x128xf32>
    %cst_78 = arith.constant dense<0.000000e+00> : vector<1x128xf32>
    %256 = tpu.matmul %233, %30, %cst_78 {dimension_numbers = #tpu.dot_dimension_numbers<[1], [0], [0], [1], [0, 0, 1, 1], [], []>} : vector<1x32xf32>, vector<32x128xf32>, vector<1x128xf32> -> vector<1x128xf32>
    %257 = arith.addf %256, %41 : vector<1x128xf32>
    %258 = arith.addf %255, %257 : vector<1x128xf32>
    %259 = arith.negf %258 : vector<1x128xf32>
    %260 = math.exp %259 : vector<1x128xf32>
    %cst_79 = arith.constant 1.000000e+00 : f32
    %261 = vector.broadcast %cst_79 : f32 to vector<1x128xf32>
    %262 = arith.addf %261, %260 : vector<1x128xf32>
    %263 = arith.divf %261, %262 : vector<1x128xf32>
    %c64_i32_80 = arith.constant 64 : i32
    %264 = tpu.dynamic_rotate %263 by %c64_i32_80 dim 1 : vector<1x128xf32>, i32 -> vector<1x128xf32>
    %265 = arith.mulf %264, %257 : vector<1x128xf32>
    %266 = arith.addf %255, %265 : vector<1x128xf32>
    %267 = math.tanh %266 : vector<1x128xf32>
    %268 = vector.extract_strided_slice %263 {offsets = [0, 32], sizes = [1, 32], strides = [1, 1]} : vector<1x128xf32> to vector<1x32xf32>
    %269 = vector.extract_strided_slice %267 {offsets = [0, 64], sizes = [1, 32], strides = [1, 1]} : vector<1x128xf32> to vector<1x32xf32>
    %cst_81 = arith.constant 1.000000e+00 : f32
    %270 = vector.broadcast %cst_81 : f32 to vector<1x32xf32>
    %271 = arith.subf %270, %268 : vector<1x32xf32>
    %272 = arith.mulf %271, %269 : vector<1x32xf32>
    %273 = arith.mulf %268, %233 : vector<1x32xf32>
    %274 = arith.addf %272, %273 : vector<1x32xf32>
    %cst_82 = arith.constant dense<0.000000e+00> : vector<1x128xf32>
    %275 = tpu.matmul %274, %28, %cst_82 {dimension_numbers = #tpu.dot_dimension_numbers<[1], [0], [0], [1], [0, 0, 1, 1], [], []>} : vector<1x32xf32>, vector<32x128xf32>, vector<1x128xf32> -> vector<1x128xf32>
    %276 = arith.addf %275, %38 : vector<1x128xf32>
    %cst_83 = arith.constant dense<0.000000e+00> : vector<1x128xf32>
    %277 = tpu.matmul %254, %32, %cst_83 {dimension_numbers = #tpu.dot_dimension_numbers<[1], [0], [0], [1], [0, 0, 1, 1], [], []>} : vector<1x32xf32>, vector<32x128xf32>, vector<1x128xf32> -> vector<1x128xf32>
    %278 = arith.addf %277, %44 : vector<1x128xf32>
    %279 = arith.addf %276, %278 : vector<1x128xf32>
    %280 = arith.negf %279 : vector<1x128xf32>
    %281 = math.exp %280 : vector<1x128xf32>
    %cst_84 = arith.constant 1.000000e+00 : f32
    %282 = vector.broadcast %cst_84 : f32 to vector<1x128xf32>
    %283 = arith.addf %282, %281 : vector<1x128xf32>
    %284 = arith.divf %282, %283 : vector<1x128xf32>
    %c64_i32_85 = arith.constant 64 : i32
    %285 = tpu.dynamic_rotate %284 by %c64_i32_85 dim 1 : vector<1x128xf32>, i32 -> vector<1x128xf32>
    %286 = arith.mulf %285, %278 : vector<1x128xf32>
    %287 = arith.addf %276, %286 : vector<1x128xf32>
    %288 = math.tanh %287 : vector<1x128xf32>
    %289 = vector.extract_strided_slice %284 {offsets = [0, 32], sizes = [1, 32], strides = [1, 1]} : vector<1x128xf32> to vector<1x32xf32>
    %290 = vector.extract_strided_slice %288 {offsets = [0, 64], sizes = [1, 32], strides = [1, 1]} : vector<1x128xf32> to vector<1x32xf32>
    %cst_86 = arith.constant 1.000000e+00 : f32
    %291 = vector.broadcast %cst_86 : f32 to vector<1x32xf32>
    %292 = arith.subf %291, %289 : vector<1x32xf32>
    %293 = arith.mulf %292, %290 : vector<1x32xf32>
    %294 = arith.mulf %289, %254 : vector<1x32xf32>
    %295 = arith.addf %293, %294 : vector<1x32xf32>
    %296 = vector.extract_strided_slice %47 {offsets = [6, 0], sizes = [1, 128], strides = [1, 1]} : vector<8x128xf32> to vector<1x128xf32>
    %cst_87 = arith.constant dense<0.000000e+00> : vector<1x128xf32>
    %297 = tpu.matmul %274, %30, %cst_87 {dimension_numbers = #tpu.dot_dimension_numbers<[1], [0], [0], [1], [0, 0, 1, 1], [], []>} : vector<1x32xf32>, vector<32x128xf32>, vector<1x128xf32> -> vector<1x128xf32>
    %298 = arith.addf %297, %41 : vector<1x128xf32>
    %299 = arith.addf %296, %298 : vector<1x128xf32>
    %300 = arith.negf %299 : vector<1x128xf32>
    %301 = math.exp %300 : vector<1x128xf32>
    %cst_88 = arith.constant 1.000000e+00 : f32
    %302 = vector.broadcast %cst_88 : f32 to vector<1x128xf32>
    %303 = arith.addf %302, %301 : vector<1x128xf32>
    %304 = arith.divf %302, %303 : vector<1x128xf32>
    %c64_i32_89 = arith.constant 64 : i32
    %305 = tpu.dynamic_rotate %304 by %c64_i32_89 dim 1 : vector<1x128xf32>, i32 -> vector<1x128xf32>
    %306 = arith.mulf %305, %298 : vector<1x128xf32>
    %307 = arith.addf %296, %306 : vector<1x128xf32>
    %308 = math.tanh %307 : vector<1x128xf32>
    %309 = vector.extract_strided_slice %304 {offsets = [0, 32], sizes = [1, 32], strides = [1, 1]} : vector<1x128xf32> to vector<1x32xf32>
    %310 = vector.extract_strided_slice %308 {offsets = [0, 64], sizes = [1, 32], strides = [1, 1]} : vector<1x128xf32> to vector<1x32xf32>
    %cst_90 = arith.constant 1.000000e+00 : f32
    %311 = vector.broadcast %cst_90 : f32 to vector<1x32xf32>
    %312 = arith.subf %311, %309 : vector<1x32xf32>
    %313 = arith.mulf %312, %310 : vector<1x32xf32>
    %314 = arith.mulf %309, %274 : vector<1x32xf32>
    %315 = arith.addf %313, %314 : vector<1x32xf32>
    %cst_91 = arith.constant dense<0.000000e+00> : vector<1x128xf32>
    %316 = tpu.matmul %315, %28, %cst_91 {dimension_numbers = #tpu.dot_dimension_numbers<[1], [0], [0], [1], [0, 0, 1, 1], [], []>} : vector<1x32xf32>, vector<32x128xf32>, vector<1x128xf32> -> vector<1x128xf32>
    %317 = arith.addf %316, %38 : vector<1x128xf32>
    %cst_92 = arith.constant dense<0.000000e+00> : vector<1x128xf32>
    %318 = tpu.matmul %295, %32, %cst_92 {dimension_numbers = #tpu.dot_dimension_numbers<[1], [0], [0], [1], [0, 0, 1, 1], [], []>} : vector<1x32xf32>, vector<32x128xf32>, vector<1x128xf32> -> vector<1x128xf32>
    %319 = arith.addf %318, %44 : vector<1x128xf32>
    %320 = arith.addf %317, %319 : vector<1x128xf32>
    %321 = arith.negf %320 : vector<1x128xf32>
    %322 = math.exp %321 : vector<1x128xf32>
    %cst_93 = arith.constant 1.000000e+00 : f32
    %323 = vector.broadcast %cst_93 : f32 to vector<1x128xf32>
    %324 = arith.addf %323, %322 : vector<1x128xf32>
    %325 = arith.divf %323, %324 : vector<1x128xf32>
    %c64_i32_94 = arith.constant 64 : i32
    %326 = tpu.dynamic_rotate %325 by %c64_i32_94 dim 1 : vector<1x128xf32>, i32 -> vector<1x128xf32>
    %327 = arith.mulf %326, %319 : vector<1x128xf32>
    %328 = arith.addf %317, %327 : vector<1x128xf32>
    %329 = math.tanh %328 : vector<1x128xf32>
    %330 = vector.extract_strided_slice %325 {offsets = [0, 32], sizes = [1, 32], strides = [1, 1]} : vector<1x128xf32> to vector<1x32xf32>
    %331 = vector.extract_strided_slice %329 {offsets = [0, 64], sizes = [1, 32], strides = [1, 1]} : vector<1x128xf32> to vector<1x32xf32>
    %cst_95 = arith.constant 1.000000e+00 : f32
    %332 = vector.broadcast %cst_95 : f32 to vector<1x32xf32>
    %333 = arith.subf %332, %330 : vector<1x32xf32>
    %334 = arith.mulf %333, %331 : vector<1x32xf32>
    %335 = arith.mulf %330, %295 : vector<1x32xf32>
    %336 = arith.addf %334, %335 : vector<1x32xf32>
    %337 = vector.extract_strided_slice %47 {offsets = [7, 0], sizes = [1, 128], strides = [1, 1]} : vector<8x128xf32> to vector<1x128xf32>
    %cst_96 = arith.constant dense<0.000000e+00> : vector<1x128xf32>
    %338 = tpu.matmul %315, %30, %cst_96 {dimension_numbers = #tpu.dot_dimension_numbers<[1], [0], [0], [1], [0, 0, 1, 1], [], []>} : vector<1x32xf32>, vector<32x128xf32>, vector<1x128xf32> -> vector<1x128xf32>
    %339 = arith.addf %338, %41 : vector<1x128xf32>
    %340 = arith.addf %337, %339 : vector<1x128xf32>
    %341 = arith.negf %340 : vector<1x128xf32>
    %342 = math.exp %341 : vector<1x128xf32>
    %cst_97 = arith.constant 1.000000e+00 : f32
    %343 = vector.broadcast %cst_97 : f32 to vector<1x128xf32>
    %344 = arith.addf %343, %342 : vector<1x128xf32>
    %345 = arith.divf %343, %344 : vector<1x128xf32>
    %c64_i32_98 = arith.constant 64 : i32
    %346 = tpu.dynamic_rotate %345 by %c64_i32_98 dim 1 : vector<1x128xf32>, i32 -> vector<1x128xf32>
    %347 = arith.mulf %346, %339 : vector<1x128xf32>
    %348 = arith.addf %337, %347 : vector<1x128xf32>
    %349 = math.tanh %348 : vector<1x128xf32>
    %350 = vector.extract_strided_slice %345 {offsets = [0, 32], sizes = [1, 32], strides = [1, 1]} : vector<1x128xf32> to vector<1x32xf32>
    %351 = vector.extract_strided_slice %349 {offsets = [0, 64], sizes = [1, 32], strides = [1, 1]} : vector<1x128xf32> to vector<1x32xf32>
    %cst_99 = arith.constant 1.000000e+00 : f32
    %352 = vector.broadcast %cst_99 : f32 to vector<1x32xf32>
    %353 = arith.subf %352, %350 : vector<1x32xf32>
    %354 = arith.mulf %353, %351 : vector<1x32xf32>
    %355 = arith.mulf %350, %315 : vector<1x32xf32>
    %356 = arith.addf %354, %355 : vector<1x32xf32>
    %cst_100 = arith.constant dense<0.000000e+00> : vector<1x128xf32>
    %357 = tpu.matmul %356, %28, %cst_100 {dimension_numbers = #tpu.dot_dimension_numbers<[1], [0], [0], [1], [0, 0, 1, 1], [], []>} : vector<1x32xf32>, vector<32x128xf32>, vector<1x128xf32> -> vector<1x128xf32>
    %358 = arith.addf %357, %38 : vector<1x128xf32>
    %cst_101 = arith.constant dense<0.000000e+00> : vector<1x128xf32>
    %359 = tpu.matmul %336, %32, %cst_101 {dimension_numbers = #tpu.dot_dimension_numbers<[1], [0], [0], [1], [0, 0, 1, 1], [], []>} : vector<1x32xf32>, vector<32x128xf32>, vector<1x128xf32> -> vector<1x128xf32>
    %360 = arith.addf %359, %44 : vector<1x128xf32>
    %361 = arith.addf %358, %360 : vector<1x128xf32>
    %362 = arith.negf %361 : vector<1x128xf32>
    %363 = math.exp %362 : vector<1x128xf32>
    %cst_102 = arith.constant 1.000000e+00 : f32
    %364 = vector.broadcast %cst_102 : f32 to vector<1x128xf32>
    %365 = arith.addf %364, %363 : vector<1x128xf32>
    %366 = arith.divf %364, %365 : vector<1x128xf32>
    %c64_i32_103 = arith.constant 64 : i32
    %367 = tpu.dynamic_rotate %366 by %c64_i32_103 dim 1 : vector<1x128xf32>, i32 -> vector<1x128xf32>
    %368 = arith.mulf %367, %360 : vector<1x128xf32>
    %369 = arith.addf %358, %368 : vector<1x128xf32>
    %370 = math.tanh %369 : vector<1x128xf32>
    %371 = vector.extract_strided_slice %366 {offsets = [0, 32], sizes = [1, 32], strides = [1, 1]} : vector<1x128xf32> to vector<1x32xf32>
    %372 = vector.extract_strided_slice %370 {offsets = [0, 64], sizes = [1, 32], strides = [1, 1]} : vector<1x128xf32> to vector<1x32xf32>
    %cst_104 = arith.constant 1.000000e+00 : f32
    %373 = vector.broadcast %cst_104 : f32 to vector<1x32xf32>
    %374 = arith.subf %373, %371 : vector<1x32xf32>
    %375 = arith.mulf %374, %372 : vector<1x32xf32>
    %376 = arith.mulf %371, %336 : vector<1x32xf32>
    %377 = arith.addf %375, %376 : vector<1x32xf32>
    %378 = tpu.concatenate %90, %131, %172, %213, %254, %295, %336, %377 in 0 : vector<1x32xf32>, vector<1x32xf32>, vector<1x32xf32>, vector<1x32xf32>, vector<1x32xf32>, vector<1x32xf32>, vector<1x32xf32>, vector<1x32xf32> -> vector<8x32xf32>
    %c0_105 = arith.constant 0 : index
    %c0_106 = arith.constant 0 : index
    %379 = vector.load %arg5[%c0_105, %c0_106] : memref<32x128xf32, #tpu.memory_space<vmem>>, vector<32x128xf32>
    %cst_107 = arith.constant dense<0.000000e+00> : vector<8x128xf32>
    %380 = tpu.matmul %378, %379, %cst_107 {dimension_numbers = #tpu.dot_dimension_numbers<[1], [0], [0], [1], [0, 0, 1, 1], [], []>} : vector<8x32xf32>, vector<32x128xf32>, vector<8x128xf32> -> vector<8x128xf32>
    %c0_108 = arith.constant 0 : index
    %c0_109 = arith.constant 0 : index
    %381 = vector.load %arg6[%c0_108, %c0_109] : memref<1x128xf32, #tpu.memory_space<vmem>>, vector<1x128xf32>
    %382 = vector.broadcast %381 : vector<1x128xf32> to vector<8x128xf32>
    %383 = arith.addf %380, %382 : vector<8x128xf32>
    %cst_110 = arith.constant dense<0xFF800000> : vector<8xf32>
    %384 = vector.multi_reduction <maximumf>, %383, %cst_110 [1] : vector<8x128xf32> to vector<8xf32>
    %385 = vector.shape_cast %384 : vector<8xf32> to vector<8x1xf32>
    %386 = vector.broadcast %385 : vector<8x1xf32> to vector<8x128xf32>
    %387 = arith.subf %383, %386 : vector<8x128xf32>
    %388 = math.exp %387 : vector<8x128xf32>
    %cst_111 = arith.constant dense<0.000000e+00> : vector<8xf32>
    %389 = vector.multi_reduction <add>, %388, %cst_111 [1] : vector<8x128xf32> to vector<8xf32>
    %390 = vector.shape_cast %389 : vector<8xf32> to vector<8x1xf32>
    %391 = math.log %390 : vector<8x1xf32>
    %392 = vector.broadcast %391 : vector<8x1xf32> to vector<8x128xf32>
    %393 = arith.subf %387, %392 : vector<8x128xf32>
    %c0_112 = arith.constant 0 : index
    %c0_113 = arith.constant 0 : index
    %394 = vector.load %arg7[%c0_112, %c0_113] : memref<8x128xf32, #tpu.memory_space<vmem>>, vector<8x128xf32>
    tpu.vector_store %arg7[%c0_112, %c0_113], %393 {strides = array<i32>} : memref<8x128xf32, #tpu.memory_space<vmem>>, vector<8x128xf32>,
    return
  }
}

</mosaic_0001>

<llo_original>
// kernel: tpu_custom_call.1
$region0: #{tpu_custom_call.1}
  #allocation0 [shape = 'u32[]', space=smem, size = 0x4, offset = 0x4, fixed_abs, tag = 'smem constant byte address 0x4 - core index']
  #allocation1 [shape = 'u32[144,128]{1,0:T(1,128)}', space=vmem, size = 0x12000, scoped, tag = 'internal scratch']
  %s0 = inlined_call_operand.vmem [shape: s32[8], index: 0, kind: input, shape index: {}]
  %s1 = inlined_call_operand.vmem [shape: f32[64,32], index: 1, kind: input, shape index: {}]
  %s2 = inlined_call_operand.vmem [shape: f32[2,32,128], index: 2, kind: input, shape index: {}]
  %s3 = inlined_call_operand.hbm [shape: f32[2,32,128], index: 3, kind: input, shape index: {}]
  %s4 = inlined_call_operand.vmem [shape: f32[2,2,128], index: 4, kind: input, shape index: {}]
  %s5 = inlined_call_operand.vmem [shape: f32[32,128], index: 5, kind: input, shape index: {}]
  %s6 = inlined_call_operand.vmem [shape: f32[1,128], index: 6, kind: input, shape index: {}]
  %s7 = inlined_call_operand.hbm [shape: f32[8,128], index: 7, kind: output, shape index: {}]
  %s8 = sld [smem:[#allocation0]]
  $region46: #{tpu_custom_call.1} parent=0
    _
  %s10 = ssub.s32 1, %s8
  %s11 = scalar_select 0, %s10, %s8
  $region1: #{tpu_custom_call.1} parent=0
    #allocation2 [shape = 'u8[512]{0}', space=smem, size = 0x200, scoped, tag = 'input window, operand 0, single buffered']
    #allocation3 [shape = 's32[1]{0}', space=sflag, size = 0x4, scoped, tag = 'scoped memory for tpu_custom_call.1']
    #allocation4 [shape = 's32[1]{0}', space=sflag, size = 0x4, scoped, tag = 'scoped memory for tpu_custom_call.1']
    #allocation5 [shape = 's32[1]{0}', space=sflag, size = 0x4, scoped, tag = 'scoped memory for tpu_custom_call.1']
    #allocation6 [shape = 'u8[32768]{0}', space=vmem, size = 0x8000, scoped, tag = 'input window, operand 3, single buffered']
    #allocation7 [shape = 'u8[4096]{0}', space=vmem, size = 0x1000, scoped, tag = 'output window, operand 0, single buffered']
    %12 = vsyncpa [#allocation5], 0
    %13 = vsyncpa [#allocation3], 0
    %14 = vsyncpa [#allocation4], 0
    // Predicated region
    $region2: #{tpu_custom_call.1} parent=1 // pred_check
      _
    $region3: #{tpu_custom_call.1} parent=1 // pred_check_branch
      %16 = sbr.rel (0) target = $region5
    $region4: #{tpu_custom_call.1} parent=1 // pred_region
      %s18 = ssub.s32 16, 16
      %19 = vsyncadd [#allocation5], %s18
      %s21 = sshll.u32 %s0, 4
      %s22 = int_to_ptr.vmem [resolvable:$true] %s21
      %24 = dma.vmem_to_smem %s22, 16, [#allocation2], [#allocation5]
    $region5: #{tpu_custom_call.1} parent=1 // pred_fallthru
      _
    // Predicated region
    $region6: #{tpu_custom_call.1} parent=1 // pred_check
      _
    $region7: #{tpu_custom_call.1} parent=1 // pred_check_branch
      %26 = sbr.rel (0) target = $region9
    $region8: #{tpu_custom_call.1} parent=1 // pred_region
      _
    $region9: #{tpu_custom_call.1} parent=1 // pred_fallthru
      _
    // Predicated region
    $region10: #{tpu_custom_call.1} parent=1 // pred_check
      _
    $region11: #{tpu_custom_call.1} parent=1 // pred_check_branch
      %28 = sbr.rel (0) target = $region13
    $region12: #{tpu_custom_call.1} parent=1 // pred_region
      _
    $region13: #{tpu_custom_call.1} parent=1 // pred_fallthru
      _
    // Predicated region
    $region14: #{tpu_custom_call.1} parent=1 // pred_check
      _
    $region15: #{tpu_custom_call.1} parent=1 // pred_check_branch
      %30 = sbr.rel (0) target = $region17
    $region16: #{tpu_custom_call.1} parent=1 // pred_region
      %s32 = ssub.s32 1024, 1024
      %33 = vsyncadd [#allocation3], %s32
      %s34 = sshll.u32 [#allocation6], 4
      %s35 = int_to_ptr.vmem [resolvable:$true] %s34
      %40 = dma.hbm_to_vmem [thread:$0]  %s3, 1024, %s35, [#allocation3], 128, 128, 8
    $region17: #{tpu_custom_call.1} parent=1 // pred_fallthru
      _
    // Predicated region
    $region18: #{tpu_custom_call.1} parent=1 // pred_check
      _
    $region19: #{tpu_custom_call.1} parent=1 // pred_check_branch
      %42 = sbr.rel (0) target = $region21
    $region20: #{tpu_custom_call.1} parent=1 // pred_region
      _
    $region21: #{tpu_custom_call.1} parent=1 // pred_fallthru
      _
    // Predicated region
    $region22: #{tpu_custom_call.1} parent=1 // pred_check
      _
    $region23: #{tpu_custom_call.1} parent=1 // pred_check_branch
      %44 = sbr.rel (0) target = $region25
    $region24: #{tpu_custom_call.1} parent=1 // pred_region
      _
    $region25: #{tpu_custom_call.1} parent=1 // pred_fallthru
      _
    // Predicated region
    $region26: #{tpu_custom_call.1} parent=1 // pred_check
      _
    $region27: #{tpu_custom_call.1} parent=1 // pred_check_branch
      %46 = sbr.rel (0) target = $region29
    $region28: #{tpu_custom_call.1} parent=1 // pred_region
      _
    $region29: #{tpu_custom_call.1} parent=1 // pred_fallthru
      _
    // Predicated region
    $region30: #{tpu_custom_call.1} parent=1 // pred_check
      _
    $region31: #{tpu_custom_call.1} parent=1 // pred_check_branch
      %48 = sbr.rel (0) target = $region33
    $region32: #{tpu_custom_call.1} parent=1 // pred_region
      %49 = dma.done [#allocation5], 16
    $region33: #{tpu_custom_call.1} parent=1 // pred_fallthru
      _
    // Predicated region
    $region34: #{tpu_custom_call.1} parent=1 // pred_check
      _
    $region35: #{tpu_custom_call.1} parent=1 // pred_check_branch
      %51 = sbr.rel (0) target = $region37
    $region36: #{tpu_custom_call.1} parent=1 // pred_region
      %52 = dma.done [#allocation3], 1024
    $region37: #{tpu_custom_call.1} parent=1 // pred_fallthru
      _
    %53 = sfence
    %s54 = sld [smem:[#allocation2]]
    %s55 = scalar_lea.vmem %s1, %s54
    %v56 = vld [vmem:[%s55] sm:$0x1]
    %s57 = sld [smem:[#allocation2 + $0x1]]
    %s58 = scalar_lea.vmem %s1, %s57
    %v59 = vld [vmem:[%s58] sm:$0x1]
    %s60 = sld [smem:[#allocation2 + $0x2]]
    %s61 = scalar_lea.vmem %s1, %s60
    %v62 = vld [vmem:[%s61] sm:$0x1]
    %s63 = sld [smem:[#allocation2 + $0x3]]
    %s64 = scalar_lea.vmem %s1, %s63
    %v65 = vld [vmem:[%s64] sm:$0x1]
    %s66 = sld [smem:[#allocation2 + $0x4]]
    %s67 = scalar_lea.vmem %s1, %s66
    %v68 = vld [vmem:[%s67] sm:$0x1]
    %s69 = sld [smem:[#allocation2 + $0x5]]
    %s70 = scalar_lea.vmem %s1, %s69
    %v71 = vld [vmem:[%s70] sm:$0x1]
    %s72 = sld [smem:[#allocation2 + $0x6]]
    %s73 = scalar_lea.vmem %s1, %s72
    %v74 = vld [vmem:[%s73] sm:$0x1]
    %s75 = sld [smem:[#allocation2 + $0x7]]
    %s76 = scalar_lea.vmem %s1, %s75
    %v77 = vld [vmem:[%s76] sm:$0x1]
    %v79 = vrot.slane %v59, 7
    %v82 = vrot.slane %v62, 6
    %v85 = vrot.slane %v65, 5
    %v88 = vrot.slane %v68, 4
    %v91 = vrot.slane %v71, 3
    %v94 = vrot.slane %v74, 2
    %v97 = vrot.slane %v77, 1
    %vm99 = vcmask 1040384
    %v100 = vsel %vm99, %v56, %v79
    %vm101 = vcmask 1041408
    %v102 = vsel %vm101, %v100, %v82
    %vm103 = vcmask 1042432
    %v104 = vsel %vm103, %v102, %v85
    %vm105 = vcmask 1043456
    %v106 = vsel %vm105, %v104, %v88
    %vm107 = vcmask 1044480
    %v108 = vsel %vm107, %v106, %v91
    %vm109 = vcmask 1045504
    %v110 = vsel %vm109, %v108, %v94
    %vm111 = vcmask 1046528
    %v112 = vsel %vm111, %v110, %v97
    %v113 = vld [vmem:[%s2] sm:$0xff]
    %v114 = vld [vmem:[%s2 + $0x8] sm:$0xff]
    %v115 = vld [vmem:[%s2 + $0x10] sm:$0xff]
    %v116 = vld [vmem:[%s2 + $0x18] sm:$0xff]
    %s117 = scalar_lea.vmem %s2, 32
    %v118 = vld [vmem:[%s117] sm:$0xff]
    %v119 = vld [vmem:[%s117 + $0x8] sm:$0xff]
    %v120 = vld [vmem:[%s117 + $0x10] sm:$0xff]
    %v121 = vld [vmem:[%s117 + $0x18] sm:$0xff]
    %v122 = vld [vmem:[#allocation6] sm:$0xff]
    %v123 = vld [vmem:[#allocation6 + $0x8] sm:$0xff]
    %v124 = vld [vmem:[#allocation6 + $0x10] sm:$0xff]
    %v125 = vld [vmem:[#allocation6 + $0x18] sm:$0xff]
    %s126 = scalar_lea.vmem [#allocation6], 32
    %v127 = vld [vmem:[%s126] sm:$0xff]
    %v128 = vld [vmem:[%s126 + $0x8] sm:$0xff]
    %v129 = vld [vmem:[%s126 + $0x10] sm:$0xff]
    %v130 = vld [vmem:[%s126 + $0x18] sm:$0xff]
    %v131 = vld [vmem:[%s4] sm:$0x3]
    %s132 = scalar_lea.vmem %s4, 2
    %v133 = vld [vmem:[%s132] sm:$0x3]
    %v134 = vlaneseq
    %v135 = vshrl.u32 %v134, 7
    %v136 = vsub.s32 0, %v135
    %v137 = vrot.slane %v131, %v136
    %vm138 = vcmask 261120
    %v140 = vsel %vm138, %v112, 0
    %142 = vmatprep.subr.mxu0 0.0
    %143 = vmatpush1.msra.mxu0 %v113
    %144 = vmatprep.subr.mxu0 0.0
    %145 = vmatpush1.msra.mxu0 %v114
    %146 = vmatprep.subr.mxu0 0.0
    %147 = vmatpush1.msra.mxu0 %v115
    %148 = vmatprep.subr.mxu0 0.0
    %149 = vmatpush1.msra.mxu0 %v116
    %150 = vmatprep.subr.mxu0 0.0
    %151 = vmatpush1.msra.mxu0 0.0
    %152 = vmatprep.subr.mxu0 0.0
    %153 = vmatpush1.msra.mxu0 0.0
    %154 = vmatprep.subr.mxu0 0.0
    %155 = vmatpush1.msra.mxu0 0.0
    %156 = vmatprep.subr.mxu0 0.0
    %157 = vmatpush1.msra.mxu0 0.0
    %158 = vmatprep.subr.mxu0 0.0
    %159 = vmatpush1.msra.mxu0 0.0
    %160 = vmatprep.subr.mxu0 0.0
    %161 = vmatpush1.msra.mxu0 0.0
    %162 = vmatprep.subr.mxu0 0.0
    %163 = vmatpush1.msra.mxu0 0.0
    %164 = vmatprep.subr.mxu0 0.0
    %165 = vmatpush1.msra.mxu0 0.0
    %166 = vmatprep.subr.mxu0 0.0
    %167 = vmatpush1.msra.mxu0 0.0
    %168 = vmatprep.subr.mxu0 0.0
    %169 = vmatpush1.msra.mxu0 0.0
    %170 = vmatprep.subr.mxu0 0.0
    %171 = vmatpush1.msra.mxu0 0.0
    %172 = vmatprep.subr.mxu0 0.0
    %173 = vmatpush1.msra.mxu0 0.0
    %174 = vmatprep.subr.mxu0 0.0
    %175 = vmatpush1.msra.mxu0 0.0
    %176 = vmatprep.subr.mxu0 0.0
    %177 = vmatpush1.msra.mxu0 0.0
    %178 = vmatprep.subr.mxu0 0.0
    %179 = vmatpush1.msra.mxu0 0.0
    %180 = vmatprep.subr.mxu0 0.0
    %181 = vmatpush1.msra.mxu0 0.0
    %182 = vmatprep.subr.mxu0 0.0
    %183 = vmatpush1.msra.mxu0 0.0
    %184 = vmatprep.subr.mxu0 0.0
    %185 = vmatpush1.msra.mxu0 0.0
    %186 = vmatprep.subr.mxu0 0.0
    %187 = vmatpush1.msra.mxu0 0.0
    %188 = vmatprep.subr.mxu0 0.0
    %189 = vmatpush1.msra.mxu0 0.0
    %190 = vmatprep.subr.mxu0 0.0
    %191 = vmatpush1.msra.mxu0 0.0
    %192 = vmatprep.subr.mxu0 0.0
    %193 = vmatpush1.msra.mxu0 0.0
    %194 = vmatprep.subr.mxu0 0.0
    %195 = vmatpush1.msra.mxu0 0.0
    %196 = vmatprep.subr.mxu0 0.0
    %197 = vmatpush1.msra.mxu0 0.0
    %198 = vmatprep.subr.mxu0 0.0
    %199 = vmatpush1.msra.mxu0 0.0
    %200 = vmatprep.subr.mxu0 0.0
    %201 = vmatpush1.msra.mxu0 0.0
    %202 = vmatprep.subr.mxu0 0.0
    %203 = vmatpush1.msra.mxu0 0.0
    %204 = vmatprep.subr.mxu0 0.0
    %205 = vmatpush1.msra.mxu0 0.0
    %206 = vmatprep.mubr.f32.mxu0 0.0
    %207 = vmatmul.mubr.f32.gmra.mrb[0].mxu0 %v140
    %v208 = vpop.f32.mrb[0].mxu0
    %v209 = vadd.f32 %v137, %v208
    %v210 = vpop.f32.mrb[0].mxu0
    %211 = vdwg.mxu0
    %v213 = vrot.slane %v131, 1
    %v216 = vsel %vm138, 0.0, 0
    %218 = vmatprep.subr.mxu0 0.0
    %219 = vmatpush1.msra.mxu0 %v122
    %220 = vmatprep.subr.mxu0 0.0
    %221 = vmatpush1.msra.mxu0 %v123
    %222 = vmatprep.subr.mxu0 0.0
    %223 = vmatpush1.msra.mxu0 %v124
    %224 = vmatprep.subr.mxu0 0.0
    %225 = vmatpush1.msra.mxu0 %v125
    %226 = vmatprep.subr.mxu0 0.0
    %227 = vmatpush1.msra.mxu0 0.0
    %228 = vmatprep.subr.mxu0 0.0
    %229 = vmatpush1.msra.mxu0 0.0
    %230 = vmatprep.subr.mxu0 0.0
    %231 = vmatpush1.msra.mxu0 0.0
    %232 = vmatprep.subr.mxu0 0.0
    %233 = vmatpush1.msra.mxu0 0.0
    %234 = vmatprep.subr.mxu0 0.0
    %235 = vmatpush1.msra.mxu0 0.0
    %236 = vmatprep.subr.mxu0 0.0
    %237 = vmatpush1.msra.mxu0 0.0
    %238 = vmatprep.subr.mxu0 0.0
    %239 = vmatpush1.msra.mxu0 0.0
    %240 = vmatprep.subr.mxu0 0.0
    %241 = vmatpush1.msra.mxu0 0.0
    %242 = vmatprep.subr.mxu0 0.0
    %243 = vmatpush1.msra.mxu0 0.0
    %244 = vmatprep.subr.mxu0 0.0
    %245 = vmatpush1.msra.mxu0 0.0
    %246 = vmatprep.subr.mxu0 0.0
    %247 = vmatpush1.msra.mxu0 0.0
    %248 = vmatprep.subr.mxu0 0.0
    %249 = vmatpush1.msra.mxu0 0.0
    %250 = vmatprep.subr.mxu0 0.0
    %251 = vmatpush1.msra.mxu0 0.0
    %252 = vmatprep.subr.mxu0 0.0
    %253 = vmatpush1.msra.mxu0 0.0
    %254 = vmatprep.subr.mxu0 0.0
    %255 = vmatpush1.msra.mxu0 0.0
    %256 = vmatprep.subr.mxu0 0.0
    %257 = vmatpush1.msra.mxu0 0.0
    %258 = vmatprep.subr.mxu0 0.0
    %259 = vmatpush1.msra.mxu0 0.0
    %260 = vmatprep.subr.mxu0 0.0
    %261 = vmatpush1.msra.mxu0 0.0
    %262 = vmatprep.subr.mxu0 0.0
    %263 = vmatpush1.msra.mxu0 0.0
    %264 = vmatprep.subr.mxu0 0.0
    %265 = vmatpush1.msra.mxu0 0.0
    %266 = vmatprep.subr.mxu0 0.0
    %267 = vmatpush1.msra.mxu0 0.0
    %268 = vmatprep.subr.mxu0 0.0
    %269 = vmatpush1.msra.mxu0 0.0
    %270 = vmatprep.subr.mxu0 0.0
    %271 = vmatpush1.msra.mxu0 0.0
    %272 = vmatprep.subr.mxu0 0.0
    %273 = vmatpush1.msra.mxu0 0.0
    %274 = vmatprep.subr.mxu0 0.0
    %275 = vmatpush1.msra.mxu0 0.0
    %276 = vmatprep.subr.mxu0 0.0
    %277 = vmatpush1.msra.mxu0 0.0
    %278 = vmatprep.subr.mxu0 0.0
    %279 = vmatpush1.msra.mxu0 0.0
    %280 = vmatprep.subr.mxu0 0.0
    %281 = vmatpush1.msra.mxu0 0.0
    %282 = vmatprep.mubr.f32.mxu0 0.0
    %283 = vmatmul.mubr.f32.gmra.mrb[0].mxu0 %v216
    %v284 = vpop.f32.mrb[0].mxu0
    %v285 = vadd.f32 %v213, %v284
    %v286 = vpop.f32.mrb[0].mxu0
    %287 = vdwg.mxu0
    %v288 = vadd.f32 %v209, %v285
    %v289 = vxor.u32 %v288, 2147483648
    %v290 = vmul.f32 %v289, 1.442695
    %v291 = vpow.pop %v290
    %v292 = vadd.f32 %v291, 1.0
    %v293 = vrcp.pop %v292
    %v294 = vmul.f32 1.0, %v293
    %295 = vrot.lane.b32.xlu0 %v294, 64
    %v296 = vpop.permute.xlu0 %295
    %v297 = vmul.f32 %v296, %v285
    %v298 = vadd.f32 %v209, %v297
    %v299 = vtanh.pop %v298
    %v300 = vsub.f32 1.0, %v294
    %302 = vrot.lane.b32.xlu0 %v299, 96
    %v303 = vpop.permute.xlu0 %302
    %v305 = vmul.f32 %v300, %v303
    %v306 = vmul.f32 %v294, 0.0
    %v307 = vadd.f32 %v305, %v306
    %309 = vrot.lane.b32.xlu0 %v307, 96
    %v310 = vpop.permute.xlu0 %309
    %v311 = vsel %vm138, %v310, 0
    %313 = vmatprep.subr.mxu0 0.0
    %314 = vmatpush1.msra.mxu0 %v118
    %315 = vmatprep.subr.mxu0 0.0
    %316 = vmatpush1.msra.mxu0 %v119
    %317 = vmatprep.subr.mxu0 0.0
    %318 = vmatpush1.msra.mxu0 %v120
    %319 = vmatprep.subr.mxu0 0.0
    %320 = vmatpush1.msra.mxu0 %v121
    %321 = vmatprep.subr.mxu0 0.0
    %322 = vmatpush1.msra.mxu0 0.0
    %323 = vmatprep.subr.mxu0 0.0
    %324 = vmatpush1.msra.mxu0 0.0
    %325 = vmatprep.subr.mxu0 0.0
    %326 = vmatpush1.msra.mxu0 0.0
    %327 = vmatprep.subr.mxu0 0.0
    %328 = vmatpush1.msra.mxu0 0.0
    %329 = vmatprep.subr.mxu0 0.0
    %330 = vmatpush1.msra.mxu0 0.0
    %331 = vmatprep.subr.mxu0 0.0
    %332 = vmatpush1.msra.mxu0 0.0
    %333 = vmatprep.subr.mxu0 0.0
    %334 = vmatpush1.msra.mxu0 0.0
    %335 = vmatprep.subr.mxu0 0.0
    %336 = vmatpush1.msra.mxu0 0.0
    %337 = vmatprep.subr.mxu0 0.0
    %338 = vmatpush1.msra.mxu0 0.0
    %339 = vmatprep.subr.mxu0 0.0
    %340 = vmatpush1.msra.mxu0 0.0
    %341 = vmatprep.subr.mxu0 0.0
    %342 = vmatpush1.msra.mxu0 0.0
    %343 = vmatprep.subr.mxu0 0.0
    %344 = vmatpush1.msra.mxu0 0.0
    %345 = vmatprep.subr.mxu0 0.0
    %346 = vmatpush1.msra.mxu0 0.0
    %347 = vmatprep.subr.mxu0 0.0
    %348 = vmatpush1.msra.mxu0 0.0
    %349 = vmatprep.subr.mxu0 0.0
    %350 = vmatpush1.msra.mxu0 0.0
    %351 = vmatprep.subr.mxu0 0.0
    %352 = vmatpush1.msra.mxu0 0.0
    %353 = vmatprep.subr.mxu0 0.0
    %354 = vmatpush1.msra.mxu0 0.0
    %355 = vmatprep.subr.mxu0 0.0
    %356 = vmatpush1.msra.mxu0 0.0
    %357 = vmatprep.subr.mxu0 0.0
    %358 = vmatpush1.msra.mxu0 0.0
    %359 = vmatprep.subr.mxu0 0.0
    %360 = vmatpush1.msra.mxu0 0.0
    %361 = vmatprep.subr.mxu0 0.0
    %362 = vmatpush1.msra.mxu0 0.0
    %363 = vmatprep.subr.mxu0 0.0
    %364 = vmatpush1.msra.mxu0 0.0
    %365 = vmatprep.subr.mxu0 0.0
    %366 = vmatpush1.msra.mxu0 0.0
    %367 = vmatprep.subr.mxu0 0.0
    %368 = vmatpush1.msra.mxu0 0.0
    %369 = vmatprep.subr.mxu0 0.0
    %370 = vmatpush1.msra.mxu0 0.0
    %371 = vmatprep.subr.mxu0 0.0
    %372 = vmatpush1.msra.mxu0 0.0
    %373 = vmatprep.subr.mxu0 0.0
    %374 = vmatpush1.msra.mxu0 0.0
    %375 = vmatprep.subr.mxu0 0.0
    %376 = vmatpush1.msra.mxu0 0.0
    %377 = vmatprep.mubr.f32.mxu0 0.0
    %378 = vmatmul.mubr.f32.gmra.mrb[0].mxu0 %v311
    %v379 = vpop.f32.mrb[0].mxu0
    %v380 = vadd.f32 %v133, %v379
    %v381 = vpop.f32.mrb[0].mxu0
    %382 = vdwg.mxu0
    %v384 = vrot.slane %v133, 1
    %386 = vmatprep.subr.mxu0 0.0
    %387 = vmatpush1.msra.mxu0 %v127
    %388 = vmatprep.subr.mxu0 0.0
    %389 = vmatpush1.msra.mxu0 %v128
    %390 = vmatprep.subr.mxu0 0.0
    %391 = vmatpush1.msra.mxu0 %v129
    %392 = vmatprep.subr.mxu0 0.0
    %393 = vmatpush1.msra.mxu0 %v130
    %394 = vmatprep.subr.mxu0 0.0
    %395 = vmatpush1.msra.mxu0 0.0
    %396 = vmatprep.subr.mxu0 0.0
    %397 = vmatpush1.msra.mxu0 0.0
    %398 = vmatprep.subr.mxu0 0.0
    %399 = vmatpush1.msra.mxu0 0.0
    %400 = vmatprep.subr.mxu0 0.0
    %401 = vmatpush1.msra.mxu0 0.0
    %402 = vmatprep.subr.mxu0 0.0
    %403 = vmatpush1.msra.mxu0 0.0
    %404 = vmatprep.subr.mxu0 0.0
    %405 = vmatpush1.msra.mxu0 0.0
    %406 = vmatprep.subr.mxu0 0.0
    %407 = vmatpush1.msra.mxu0 0.0
    %408 = vmatprep.subr.mxu0 0.0
    %409 = vmatpush1.msra.mxu0 0.0
    %410 = vmatprep.subr.mxu0 0.0
    %411 = vmatpush1.msra.mxu0 0.0
    %412 = vmatprep.subr.mxu0 0.0
    %413 = vmatpush1.msra.mxu0 0.0
    %414 = vmatprep.subr.mxu0 0.0
    %415 = vmatpush1.msra.mxu0 0.0
    %416 = vmatprep.subr.mxu0 0.0
    %417 = vmatpush1.msra.mxu0 0.0
    %418 = vmatprep.subr.mxu0 0.0
    %419 = vmatpush1.msra.mxu0 0.0
    %420 = vmatprep.subr.mxu0 0.0
    %421 = vmatpush1.msra.mxu0 0.0
    %422 = vmatprep.subr.mxu0 0.0
    %423 = vmatpush1.msra.mxu0 0.0
    %424 = vmatprep.subr.mxu0 0.0
    %425 = vmatpush1.msra.mxu0 0.0
    %426 = vmatprep.subr.mxu0 0.0
    %427 = vmatpush1.msra.mxu0 0.0
    %428 = vmatprep.subr.mxu0 0.0
    %429 = vmatpush1.msra.mxu0 0.0
    %430 = vmatprep.subr.mxu0 0.0
    %431 = vmatpush1.msra.mxu0 0.0
    %432 = vmatprep.subr.mxu0 0.0
    %433 = vmatpush1.msra.mxu0 0.0
    %434 = vmatprep.subr.mxu0 0.0
    %435 = vmatpush1.msra.mxu0 0.0
    %436 = vmatprep.subr.mxu0 0.0
    %437 = vmatpush1.msra.mxu0 0.0
    %438 = vmatprep.subr.mxu0 0.0
    %439 = vmatpush1.msra.mxu0 0.0
    %440 = vmatprep.subr.mxu0 0.0
    %441 = vmatpush1.msra.mxu0 0.0
    %442 = vmatprep.subr.mxu0 0.0
    %443 = vmatpush1.msra.mxu0 0.0
    %444 = vmatprep.subr.mxu0 0.0
    %445 = vmatpush1.msra.mxu0 0.0
    %446 = vmatprep.subr.mxu0 0.0
    %447 = vmatpush1.msra.mxu0 0.0
    %448 = vmatprep.subr.mxu0 0.0
    %449 = vmatpush1.msra.mxu0 0.0
    %450 = vmatprep.mubr.f32.mxu0 0.0
    %451 = vmatmul.mubr.f32.gmra.mrb[0].mxu0 %v216
    %v452 = vpop.f32.mrb[0].mxu0
    %v453 = vadd.f32 %v384, %v452
    %v454 = vpop.f32.mrb[0].mxu0
    %455 = vdwg.mxu0
    %v456 = vadd.f32 %v380, %v453
    %v457 = vxor.u32 %v456, 2147483648
    %v458 = vmul.f32 %v457, 1.442695
    %v459 = vpow.pop %v458
    %v460 = vadd.f32 %v459, 1.0
    %v461 = vrcp.pop %v460
    %v462 = vmul.f32 1.0, %v461
    %463 = vrot.lane.b32.xlu0 %v462, 64
    %v464 = vpop.permute.xlu0 %463
    %v465 = vmul.f32 %v464, %v453
    %v466 = vadd.f32 %v380, %v465
    %v467 = vtanh.pop %v466
    %v468 = vsub.f32 1.0, %v462
    %470 = vrot.lane.b32.xlu0 %v467, 96
    %v471 = vpop.permute.xlu0 %470
    %v473 = vmul.f32 %v468, %v471
    %v474 = vmul.f32 %v462, 0.0
    %v475 = vadd.f32 %v473, %v474
    %476 = vmatprep.subr.mxu0 0.0
    %477 = vmatpush1.msra.mxu0 %v122
    %478 = vmatprep.subr.mxu0 0.0
    %479 = vmatpush1.msra.mxu0 %v123
    %480 = vmatprep.subr.mxu0 0.0
    %481 = vmatpush1.msra.mxu0 %v124
    %482 = vmatprep.subr.mxu0 0.0
    %483 = vmatpush1.msra.mxu0 %v125
    %484 = vmatprep.subr.mxu0 0.0
    %485 = vmatpush1.msra.mxu0 0.0
    %486 = vmatprep.subr.mxu0 0.0
    %487 = vmatpush1.msra.mxu0 0.0
    %488 = vmatprep.subr.mxu0 0.0
    %489 = vmatpush1.msra.mxu0 0.0
    %490 = vmatprep.subr.mxu0 0.0
    %491 = vmatpush1.msra.mxu0 0.0
    %492 = vmatprep.subr.mxu0 0.0
    %493 = vmatpush1.msra.mxu0 0.0
    %494 = vmatprep.subr.mxu0 0.0
    %495 = vmatpush1.msra.mxu0 0.0
    %496 = vmatprep.subr.mxu0 0.0
    %497 = vmatpush1.msra.mxu0 0.0
    %498 = vmatprep.subr.mxu0 0.0
    %499 = vmatpush1.msra.mxu0 0.0
    %500 = vmatprep.subr.mxu0 0.0
    %501 = vmatpush1.msra.mxu0 0.0
    %502 = vmatprep.subr.mxu0 0.0
    %503 = vmatpush1.msra.mxu0 0.0
    %504 = vmatprep.subr.mxu0 0.0
    %505 = vmatpush1.msra.mxu0 0.0
    %506 = vmatprep.subr.mxu0 0.0
    %507 = vmatpush1.msra.mxu0 0.0
    %508 = vmatprep.subr.mxu0 0.0
    %509 = vmatpush1.msra.mxu0 0.0
    %510 = vmatprep.subr.mxu0 0.0
    %511 = vmatpush1.msra.mxu0 0.0
    %512 = vmatprep.subr.mxu0 0.0
    %513 = vmatpush1.msra.mxu0 0.0
    %514 = vmatprep.subr.mxu0 0.0
    %515 = vmatpush1.msra.mxu0 0.0
    %516 = vmatprep.subr.mxu0 0.0
    %517 = vmatpush1.msra.mxu0 0.0
    %518 = vmatprep.subr.mxu0 0.0
    %519 = vmatpush1.msra.mxu0 0.0
    %520 = vmatprep.subr.mxu0 0.0
    %521 = vmatpush1.msra.mxu0 0.0
    %522 = vmatprep.subr.mxu0 0.0
    %523 = vmatpush1.msra.mxu0 0.0
    %524 = vmatprep.subr.mxu0 0.0
    %525 = vmatpush1.msra.mxu0 0.0
    %526 = vmatprep.subr.mxu0 0.0
    %527 = vmatpush1.msra.mxu0 0.0
    %528 = vmatprep.subr.mxu0 0.0
    %529 = vmatpush1.msra.mxu0 0.0
    %530 = vmatprep.subr.mxu0 0.0
    %531 = vmatpush1.msra.mxu0 0.0
    %532 = vmatprep.subr.mxu0 0.0
    %533 = vmatpush1.msra.mxu0 0.0
    %534 = vmatprep.subr.mxu0 0.0
    %535 = vmatpush1.msra.mxu0 0.0
    %536 = vmatprep.subr.mxu0 0.0
    %537 = vmatpush1.msra.mxu0 0.0
    %538 = vmatprep.subr.mxu0 0.0
    %539 = vmatpush1.msra.mxu0 0.0
    %540 = vmatprep.mubr.f32.mxu0 0.0
    %541 = vmatmul.mubr.f32.gmra.mrb[0].mxu0 %v311
    %v542 = vpop.f32.mrb[0].mxu0
    %v543 = vadd.f32 %v213, %v542
    %v544 = vpop.f32.mrb[0].mxu0
    %545 = vdwg.mxu0
    %v547 = vrot.slane %v543, 7
    %v549 = vadd.f32 %v209, %v547
    %v550 = vxor.u32 %v549, 2147483648
    %v551 = vmul.f32 %v550, 1.442695
    %v552 = vpow.pop %v551
    %v553 = vadd.f32 %v552, 1.0
    %v554 = vrcp.pop %v553
    %v555 = vmul.f32 1.0, %v554
    %v557 = vrot.slane %v555, 1
    %559 = vrot.lane.b32.xlu0 %v557, 64
    %v560 = vpop.permute.xlu0 %559
    %v561 = vmul.f32 %v560, %v543
    %v563 = vrot.slane %v561, 7
    %v565 = vadd.f32 %v209, %v563
    %v566 = vtanh.pop %v565
    %v567 = vsub.f32 1.0, %v555
    %569 = vrot.lane.b32.xlu0 %v566, 96
    %v570 = vpop.permute.xlu0 %569
    %v572 = vmul.f32 %v567, %v570
    %v573 = vrot.slane %v307, 7
    %v575 = vmul.f32 %v555, %v573
    %v576 = vadd.f32 %v572, %v575
    %v578 = vrot.slane %v576, 1
    %579 = vrot.lane.b32.xlu0 %v578, 96
    %v580 = vpop.permute.xlu0 %579
    %v581 = vsel %vm138, %v580, 0
    %583 = vmatprep.subr.mxu0 0.0
    %584 = vmatpush1.msra.mxu0 %v118
    %585 = vmatprep.subr.mxu0 0.0
    %586 = vmatpush1.msra.mxu0 %v119
    %587 = vmatprep.subr.mxu0 0.0
    %588 = vmatpush1.msra.mxu0 %v120
    %589 = vmatprep.subr.mxu0 0.0
    %590 = vmatpush1.msra.mxu0 %v121
    %591 = vmatprep.subr.mxu0 0.0
    %592 = vmatpush1.msra.mxu0 0.0
    %593 = vmatprep.subr.mxu0 0.0
    %594 = vmatpush1.msra.mxu0 0.0
    %595 = vmatprep.subr.mxu0 0.0
    %596 = vmatpush1.msra.mxu0 0.0
    %597 = vmatprep.subr.mxu0 0.0
    %598 = vmatpush1.msra.mxu0 0.0
    %599 = vmatprep.subr.mxu0 0.0
    %600 = vmatpush1.msra.mxu0 0.0
    %601 = vmatprep.subr.mxu0 0.0
    %602 = vmatpush1.msra.mxu0 0.0
    %603 = vmatprep.subr.mxu0 0.0
    %604 = vmatpush1.msra.mxu0 0.0
    %605 = vmatprep.subr.mxu0 0.0
    %606 = vmatpush1.msra.mxu0 0.0
    %607 = vmatprep.subr.mxu0 0.0
    %608 = vmatpush1.msra.mxu0 0.0
    %609 = vmatprep.subr.mxu0 0.0
    %610 = vmatpush1.msra.mxu0 0.0
    %611 = vmatprep.subr.mxu0 0.0
    %612 = vmatpush1.msra.mxu0 0.0
    %613 = vmatprep.subr.mxu0 0.0
    %614 = vmatpush1.msra.mxu0 0.0
    %615 = vmatprep.subr.mxu0 0.0
    %616 = vmatpush1.msra.mxu0 0.0
    %617 = vmatprep.subr.mxu0 0.0
    %618 = vmatpush1.msra.mxu0 0.0
    %619 = vmatprep.subr.mxu0 0.0
    %620 = vmatpush1.msra.mxu0 0.0
    %621 = vmatprep.subr.mxu0 0.0
    %622 = vmatpush1.msra.mxu0 0.0
    %623 = vmatprep.subr.mxu0 0.0
    %624 = vmatpush1.msra.mxu0 0.0
    %625 = vmatprep.subr.mxu0 0.0
    %626 = vmatpush1.msra.mxu0 0.0
    %627 = vmatprep.subr.mxu0 0.0
    %628 = vmatpush1.msra.mxu0 0.0
    %629 = vmatprep.subr.mxu0 0.0
    %630 = vmatpush1.msra.mxu0 0.0
    %631 = vmatprep.subr.mxu0 0.0
    %632 = vmatpush1.msra.mxu0 0.0
    %633 = vmatprep.subr.mxu0 0.0
    %634 = vmatpush1.msra.mxu0 0.0
    %635 = vmatprep.subr.mxu0 0.0
    %636 = vmatpush1.msra.mxu0 0.0
    %637 = vmatprep.subr.mxu0 0.0
    %638 = vmatpush1.msra.mxu0 0.0
    %639 = vmatprep.subr.mxu0 0.0
    %640 = vmatpush1.msra.mxu0 0.0
    %641 = vmatprep.subr.mxu0 0.0
    %642 = vmatpush1.msra.mxu0 0.0
    %643 = vmatprep.subr.mxu0 0.0
    %644 = vmatpush1.msra.mxu0 0.0
    %645 = vmatprep.subr.mxu0 0.0
    %646 = vmatpush1.msra.mxu0 0.0
    %647 = vmatprep.mubr.f32.mxu0 0.0
    %648 = vmatmul.mubr.f32.gmra.mrb[0].mxu0 %v581
    %v649 = vpop.f32.mrb[0].mxu0
    %v650 = vadd.f32 %v133, %v649
    %v651 = vpop.f32.mrb[0].mxu0
    %652 = vdwg.mxu0
    %654 = vrot.lane.b32.xlu0 %v475, 96
    %v655 = vpop.permute.xlu0 %654
    %v656 = vsel %vm138, %v655, 0
    %658 = vmatprep.subr.mxu0 0.0
    %659 = vmatpush1.msra.mxu0 %v127
    %660 = vmatprep.subr.mxu0 0.0
    %661 = vmatpush1.msra.mxu0 %v128
    %662 = vmatprep.subr.mxu0 0.0
    %663 = vmatpush1.msra.mxu0 %v129
    %664 = vmatprep.subr.mxu0 0.0
    %665 = vmatpush1.msra.mxu0 %v130
    %666 = vmatprep.subr.mxu0 0.0
    %667 = vmatpush1.msra.mxu0 0.0
    %668 = vmatprep.subr.mxu0 0.0
    %669 = vmatpush1.msra.mxu0 0.0
    %670 = vmatprep.subr.mxu0 0.0
    %671 = vmatpush1.msra.mxu0 0.0
    %672 = vmatprep.subr.mxu0 0.0
    %673 = vmatpush1.msra.mxu0 0.0
    %674 = vmatprep.subr.mxu0 0.0
    %675 = vmatpush1.msra.mxu0 0.0
    %676 = vmatprep.subr.mxu0 0.0
    %677 = vmatpush1.msra.mxu0 0.0
    %678 = vmatprep.subr.mxu0 0.0
    %679 = vmatpush1.msra.mxu0 0.0
    %680 = vmatprep.subr.mxu0 0.0
    %681 = vmatpush1.msra.mxu0 0.0
    %682 = vmatprep.subr.mxu0 0.0
    %683 = vmatpush1.msra.mxu0 0.0
    %684 = vmatprep.subr.mxu0 0.0
    %685 = vmatpush1.msra.mxu0 0.0
    %686 = vmatprep.subr.mxu0 0.0
    %687 = vmatpush1.msra.mxu0 0.0
    %688 = vmatprep.subr.mxu0 0.0
    %689 = vmatpush1.msra.mxu0 0.0
    %690 = vmatprep.subr.mxu0 0.0
    %691 = vmatpush1.msra.mxu0 0.0
    %692 = vmatprep.subr.mxu0 0.0
    %693 = vmatpush1.msra.mxu0 0.0
    %694 = vmatprep.subr.mxu0 0.0
    %695 = vmatpush1.msra.mxu0 0.0
    %696 = vmatprep.subr.mxu0 0.0
    %697 = vmatpush1.msra.mxu0 0.0
    %698 = vmatprep.subr.mxu0 0.0
    %699 = vmatpush1.msra.mxu0 0.0
    %700 = vmatprep.subr.mxu0 0.0
    %701 = vmatpush1.msra.mxu0 0.0
    %702 = vmatprep.subr.mxu0 0.0
    %703 = vmatpush1.msra.mxu0 0.0
    %704 = vmatprep.subr.mxu0 0.0
    %705 = vmatpush1.msra.mxu0 0.0
    %706 = vmatprep.subr.mxu0 0.0
    %707 = vmatpush1.msra.mxu0 0.0
    %708 = vmatprep.subr.mxu0 0.0
    %709 = vmatpush1.msra.mxu0 0.0
    %710 = vmatprep.subr.mxu0 0.0
    %711 = vmatpush1.msra.mxu0 0.0
    %712 = vmatprep.subr.mxu0 0.0
    %713 = vmatpush1.msra.mxu0 0.0
    %714 = vmatprep.subr.mxu0 0.0
    %715 = vmatpush1.msra.mxu0 0.0
    %716 = vmatprep.subr.mxu0 0.0
    %717 = vmatpush1.msra.mxu0 0.0
    %718 = vmatprep.subr.mxu0 0.0
    %719 = vmatpush1.msra.mxu0 0.0
    %720 = vmatprep.subr.mxu0 0.0
    %721 = vmatpush1.msra.mxu0 0.0
    %722 = vmatprep.mubr.f32.mxu0 0.0
    %723 = vmatmul.mubr.f32.gmra.mrb[0].mxu0 %v656
    %v724 = vpop.f32.mrb[0].mxu0
    %v725 = vadd.f32 %v384, %v724
    %v726 = vpop.f32.mrb[0].mxu0
    %727 = vdwg.mxu0
    %v728 = vadd.f32 %v650, %v725
    %v729 = vxor.u32 %v728, 2147483648
    %v730 = vmul.f32 %v729, 1.442695
    %v731 = vpow.pop %v730
    %v732 = vadd.f32 %v731, 1.0
    %v733 = vrcp.pop %v732
    %v734 = vmul.f32 1.0, %v733
    %735 = vrot.lane.b32.xlu0 %v734, 64
    %v736 = vpop.permute.xlu0 %735
    %v737 = vmul.f32 %v736, %v725
    %v738 = vadd.f32 %v650, %v737
    %v739 = vtanh.pop %v738
    %v740 = vsub.f32 1.0, %v734
    %742 = vrot.lane.b32.xlu0 %v739, 96
    %v743 = vpop.permute.xlu0 %742
    %v745 = vmul.f32 %v740, %v743
    %v746 = vmul.f32 %v734, %v475
    %v747 = vadd.f32 %v745, %v746
    %748 = vmatprep.subr.mxu0 0.0
    %749 = vmatpush1.msra.mxu0 %v122
    %750 = vmatprep.subr.mxu0 0.0
    %751 = vmatpush1.msra.mxu0 %v123
    %752 = vmatprep.subr.mxu0 0.0
    %753 = vmatpush1.msra.mxu0 %v124
    %754 = vmatprep.subr.mxu0 0.0
    %755 = vmatpush1.msra.mxu0 %v125
    %756 = vmatprep.subr.mxu0 0.0
    %757 = vmatpush1.msra.mxu0 0.0
    %758 = vmatprep.subr.mxu0 0.0
    %759 = vmatpush1.msra.mxu0 0.0
    %760 = vmatprep.subr.mxu0 0.0
    %761 = vmatpush1.msra.mxu0 0.0
    %762 = vmatprep.subr.mxu0 0.0
    %763 = vmatpush1.msra.mxu0 0.0
    %764 = vmatprep.subr.mxu0 0.0
    %765 = vmatpush1.msra.mxu0 0.0
    %766 = vmatprep.subr.mxu0 0.0
    %767 = vmatpush1.msra.mxu0 0.0
    %768 = vmatprep.subr.mxu0 0.0
    %769 = vmatpush1.msra.mxu0 0.0
    %770 = vmatprep.subr.mxu0 0.0
    %771 = vmatpush1.msra.mxu0 0.0
    %772 = vmatprep.subr.mxu0 0.0
    %773 = vmatpush1.msra.mxu0 0.0
    %774 = vmatprep.subr.mxu0 0.0
    %775 = vmatpush1.msra.mxu0 0.0
    %776 = vmatprep.subr.mxu0 0.0
    %777 = vmatpush1.msra.mxu0 0.0
    %778 = vmatprep.subr.mxu0 0.0
    %779 = vmatpush1.msra.mxu0 0.0
    %780 = vmatprep.subr.mxu0 0.0
    %781 = vmatpush1.msra.mxu0 0.0
    %782 = vmatprep.subr.mxu0 0.0
    %783 = vmatpush1.msra.mxu0 0.0
    %784 = vmatprep.subr.mxu0 0.0
    %785 = vmatpush1.msra.mxu0 0.0
    %786 = vmatprep.subr.mxu0 0.0
    %787 = vmatpush1.msra.mxu0 0.0
    %788 = vmatprep.subr.mxu0 0.0
    %789 = vmatpush1.msra.mxu0 0.0
    %790 = vmatprep.subr.mxu0 0.0
    %791 = vmatpush1.msra.mxu0 0.0
    %792 = vmatprep.subr.mxu0 0.0
    %793 = vmatpush1.msra.mxu0 0.0
    %794 = vmatprep.subr.mxu0 0.0
    %795 = vmatpush1.msra.mxu0 0.0
    %796 = vmatprep.subr.mxu0 0.0
    %797 = vmatpush1.msra.mxu0 0.0
    %798 = vmatprep.subr.mxu0 0.0
    %799 = vmatpush1.msra.mxu0 0.0
    %800 = vmatprep.subr.mxu0 0.0
    %801 = vmatpush1.msra.mxu0 0.0
    %802 = vmatprep.subr.mxu0 0.0
    %803 = vmatpush1.msra.mxu0 0.0
    %804 = vmatprep.subr.mxu0 0.0
    %805 = vmatpush1.msra.mxu0 0.0
    %806 = vmatprep.subr.mxu0 0.0
    %807 = vmatpush1.msra.mxu0 0.0
    %808 = vmatprep.subr.mxu0 0.0
    %809 = vmatpush1.msra.mxu0 0.0
    %810 = vmatprep.subr.mxu0 0.0
    %811 = vmatpush1.msra.mxu0 0.0
    %812 = vmatprep.mubr.f32.mxu0 0.0
    %813 = vmatmul.mubr.f32.gmra.mrb[0].mxu0 %v581
    %v814 = vpop.f32.mrb[0].mxu0
    %v815 = vadd.f32 %v213, %v814
    %v816 = vpop.f32.mrb[0].mxu0
    %817 = vdwg.mxu0
    %v819 = vrot.slane %v815, 6
    %v821 = vadd.f32 %v209, %v819
    %v822 = vxor.u32 %v821, 2147483648
    %v823 = vmul.f32 %v822, 1.442695
    %v824 = vpow.pop %v823
    %v825 = vadd.f32 %v824, 1.0
    %v826 = vrcp.pop %v825
    %v827 = vmul.f32 1.0, %v826
    %v829 = vrot.slane %v827, 2
    %831 = vrot.lane.b32.xlu0 %v829, 64
    %v832 = vpop.permute.xlu0 %831
    %v833 = vmul.f32 %v832, %v815
    %v835 = vrot.slane %v833, 6
    %v837 = vadd.f32 %v209, %v835
    %v838 = vtanh.pop %v837
    %v839 = vsub.f32 1.0, %v827
    %841 = vrot.lane.b32.xlu0 %v838, 96
    %v842 = vpop.permute.xlu0 %841
    %v844 = vmul.f32 %v839, %v842
    %v845 = vrot.slane %v576, 7
    %v847 = vmul.f32 %v827, %v845
    %v848 = vadd.f32 %v844, %v847
    %v850 = vrot.slane %v848, 2
    %851 = vrot.lane.b32.xlu0 %v850, 96
    %v852 = vpop.permute.xlu0 %851
    %v853 = vsel %vm138, %v852, 0
    %855 = vmatprep.subr.mxu0 0.0
    %856 = vmatpush1.msra.mxu0 %v118
    %857 = vmatprep.subr.mxu0 0.0
    %858 = vmatpush1.msra.mxu0 %v119
    %859 = vmatprep.subr.mxu0 0.0
    %860 = vmatpush1.msra.mxu0 %v120
    %861 = vmatprep.subr.mxu0 0.0
    %862 = vmatpush1.msra.mxu0 %v121
    %863 = vmatprep.subr.mxu0 0.0
    %864 = vmatpush1.msra.mxu0 0.0
    %865 = vmatprep.subr.mxu0 0.0
    %866 = vmatpush1.msra.mxu0 0.0
    %867 = vmatprep.subr.mxu0 0.0
    %868 = vmatpush1.msra.mxu0 0.0
    %869 = vmatprep.subr.mxu0 0.0
    %870 = vmatpush1.msra.mxu0 0.0
    %871 = vmatprep.subr.mxu0 0.0
    %872 = vmatpush1.msra.mxu0 0.0
    %873 = vmatprep.subr.mxu0 0.0
    %874 = vmatpush1.msra.mxu0 0.0
    %875 = vmatprep.subr.mxu0 0.0
    %876 = vmatpush1.msra.mxu0 0.0
    %877 = vmatprep.subr.mxu0 0.0
    %878 = vmatpush1.msra.mxu0 0.0
    %879 = vmatprep.subr.mxu0 0.0
    %880 = vmatpush1.msra.mxu0 0.0
    %881 = vmatprep.subr.mxu0 0.0
    %882 = vmatpush1.msra.mxu0 0.0
    %883 = vmatprep.subr.mxu0 0.0
    %884 = vmatpush1.msra.mxu0 0.0
    %885 = vmatprep.subr.mxu0 0.0
    %886 = vmatpush1.msra.mxu0 0.0
    %887 = vmatprep.subr.mxu0 0.0
    %888 = vmatpush1.msra.mxu0 0.0
    %889 = vmatprep.subr.mxu0 0.0
    %890 = vmatpush1.msra.mxu0 0.0
    %891 = vmatprep.subr.mxu0 0.0
    %892 = vmatpush1.msra.mxu0 0.0
    %893 = vmatprep.subr.mxu0 0.0
    %894 = vmatpush1.msra.mxu0 0.0
    %895 = vmatprep.subr.mxu0 0.0
    %896 = vmatpush1.msra.mxu0 0.0
    %897 = vmatprep.subr.mxu0 0.0
    %898 = vmatpush1.msra.mxu0 0.0
    %899 = vmatprep.subr.mxu0 0.0
    %900 = vmatpush1.msra.mxu0 0.0
    %901 = vmatprep.subr.mxu0 0.0
    %902 = vmatpush1.msra.mxu0 0.0
    %903 = vmatprep.subr.mxu0 0.0
    %904 = vmatpush1.msra.mxu0 0.0
    %905 = vmatprep.subr.mxu0 0.0
    %906 = vmatpush1.msra.mxu0 0.0
    %907 = vmatprep.subr.mxu0 0.0
    %908 = vmatpush1.msra.mxu0 0.0
    %909 = vmatprep.subr.mxu0 0.0
    %910 = vmatpush1.msra.mxu0 0.0
    %911 = vmatprep.subr.mxu0 0.0
    %912 = vmatpush1.msra.mxu0 0.0
    %913 = vmatprep.subr.mxu0 0.0
    %914 = vmatpush1.msra.mxu0 0.0
    %915 = vmatprep.subr.mxu0 0.0
    %916 = vmatpush1.msra.mxu0 0.0
    %917 = vmatprep.subr.mxu0 0.0
    %918 = vmatpush1.msra.mxu0 0.0
    %919 = vmatprep.mubr.f32.mxu0 0.0
    %920 = vmatmul.mubr.f32.gmra.mrb[0].mxu0 %v853
    %v921 = vpop.f32.mrb[0].mxu0
    %v922 = vadd.f32 %v133, %v921
    %v923 = vpop.f32.mrb[0].mxu0
    %924 = vdwg.mxu0
    %926 = vrot.lane.b32.xlu0 %v747, 96
    %v927 = vpop.permute.xlu0 %926
    %v928 = vsel %vm138, %v927, 0
    %930 = vmatprep.subr.mxu0 0.0
    %931 = vmatpush1.msra.mxu0 %v127
    %932 = vmatprep.subr.mxu0 0.0
    %933 = vmatpush1.msra.mxu0 %v128
    %934 = vmatprep.subr.mxu0 0.0
    %935 = vmatpush1.msra.mxu0 %v129
    %936 = vmatprep.subr.mxu0 0.0
    %937 = vmatpush1.msra.mxu0 %v130
    %938 = vmatprep.subr.mxu0 0.0
    %939 = vmatpush1.msra.mxu0 0.0
    %940 = vmatprep.subr.mxu0 0.0
    %941 = vmatpush1.msra.mxu0 0.0
    %942 = vmatprep.subr.mxu0 0.0
    %943 = vmatpush1.msra.mxu0 0.0
    %944 = vmatprep.subr.mxu0 0.0
    %945 = vmatpush1.msra.mxu0 0.0
    %946 = vmatprep.subr.mxu0 0.0
    %947 = vmatpush1.msra.mxu0 0.0
    %948 = vmatprep.subr.mxu0 0.0
    %949 = vmatpush1.msra.mxu0 0.0
    %950 = vmatprep.subr.mxu0 0.0
    %951 = vmatpush1.msra.mxu0 0.0
    %952 = vmatprep.subr.mxu0 0.0
    %953 = vmatpush1.msra.mxu0 0.0
    %954 = vmatprep.subr.mxu0 0.0
    %955 = vmatpush1.msra.mxu0 0.0
    %956 = vmatprep.subr.mxu0 0.0
    %957 = vmatpush1.msra.mxu0 0.0
    %958 = vmatprep.subr.mxu0 0.0
    %959 = vmatpush1.msra.mxu0 0.0
    %960 = vmatprep.subr.mxu0 0.0
    %961 = vmatpush1.msra.mxu0 0.0
    %962 = vmatprep.subr.mxu0 0.0
    %963 = vmatpush1.msra.mxu0 0.0
    %964 = vmatprep.subr.mxu0 0.0
    %965 = vmatpush1.msra.mxu0 0.0
    %966 = vmatprep.subr.mxu0 0.0
    %967 = vmatpush1.msra.mxu0 0.0
    %968 = vmatprep.subr.mxu0 0.0
    %969 = vmatpush1.msra.mxu0 0.0
    %970 = vmatprep.subr.mxu0 0.0
    %971 = vmatpush1.msra.mxu0 0.0
    %972 = vmatprep.subr.mxu0 0.0
    %973 = vmatpush1.msra.mxu0 0.0
    %974 = vmatprep.subr.mxu0 0.0
    %975 = vmatpush1.msra.mxu0 0.0
    %976 = vmatprep.subr.mxu0 0.0
    %977 = vmatpush1.msra.mxu0 0.0
    %978 = vmatprep.subr.mxu0 0.0
    %979 = vmatpush1.msra.mxu0 0.0
    %980 = vmatprep.subr.mxu0 0.0
    %981 = vmatpush1.msra.mxu0 0.0
    %982 = vmatprep.subr.mxu0 0.0
    %983 = vmatpush1.msra.mxu0 0.0
    %984 = vmatprep.subr.mxu0 0.0
    %985 = vmatpush1.msra.mxu0 0.0
    %986 = vmatprep.subr.mxu0 0.0
    %987 = vmatpush1.msra.mxu0 0.0
    %988 = vmatprep.subr.mxu0 0.0
    %989 = vmatpush1.msra.mxu0 0.0
    %990 = vmatprep.subr.mxu0 0.0
    %991 = vmatpush1.msra.mxu0 0.0
    %992 = vmatprep.subr.mxu0 0.0
    %993 = vmatpush1.msra.mxu0 0.0
    %994 = vmatprep.mubr.f32.mxu0 0.0
    %995 = vmatmul.mubr.f32.gmra.mrb[0].mxu0 %v928
    %v996 = vpop.f32.mrb[0].mxu0
    %v997 = vadd.f32 %v384, %v996
    %v998 = vpop.f32.mrb[0].mxu0
    %999 = vdwg.mxu0
    %v1000 = vadd.f32 %v922, %v997
    %v1001 = vxor.u32 %v1000, 2147483648
    %v1002 = vmul.f32 %v1001, 1.442695
    %v1003 = vpow.pop %v1002
    %v1004 = vadd.f32 %v1003, 1.0
    %v1005 = vrcp.pop %v1004
    %v1006 = vmul.f32 1.0, %v1005
    %1007 = vrot.lane.b32.xlu0 %v1006, 64
    %v1008 = vpop.permute.xlu0 %1007
    %v1009 = vmul.f32 %v1008, %v997
    %v1010 = vadd.f32 %v922, %v1009
    %v1011 = vtanh.pop %v1010
    %v1012 = vsub.f32 1.0, %v1006
    %1014 = vrot.lane.b32.xlu0 %v1011, 96
    %v1015 = vpop.permute.xlu0 %1014
    %v1017 = vmul.f32 %v1012, %v1015
    %v1018 = vmul.f32 %v1006, %v747
    %v1019 = vadd.f32 %v1017, %v1018
    %1020 = vmatprep.subr.mxu0 0.0
    %1021 = vmatpush1.msra.mxu0 %v122
    %1022 = vmatprep.subr.mxu0 0.0
    %1023 = vmatpush1.msra.mxu0 %v123
    %1024 = vmatprep.subr.mxu0 0.0
    %1025 = vmatpush1.msra.mxu0 %v124
    %1026 = vmatprep.subr.mxu0 0.0
    %1027 = vmatpush1.msra.mxu0 %v125
    %1028 = vmatprep.subr.mxu0 0.0
    %1029 = vmatpush1.msra.mxu0 0.0
    %1030 = vmatprep.subr.mxu0 0.0
    %1031 = vmatpush1.msra.mxu0 0.0
    %1032 = vmatprep.subr.mxu0 0.0
    %1033 = vmatpush1.msra.mxu0 0.0
    %1034 = vmatprep.subr.mxu0 0.0
    %1035 = vmatpush1.msra.mxu0 0.0
    %1036 = vmatprep.subr.mxu0 0.0
    %1037 = vmatpush1.msra.mxu0 0.0
    %1038 = vmatprep.subr.mxu0 0.0
    %1039 = vmatpush1.msra.mxu0 0.0
    %1040 = vmatprep.subr.mxu0 0.0
    %1041 = vmatpush1.msra.mxu0 0.0
    %1042 = vmatprep.subr.mxu0 0.0
    %1043 = vmatpush1.msra.mxu0 0.0
    %1044 = vmatprep.subr.mxu0 0.0
    %1045 = vmatpush1.msra.mxu0 0.0
    %1046 = vmatprep.subr.mxu0 0.0
    %1047 = vmatpush1.msra.mxu0 0.0
    %1048 = vmatprep.subr.mxu0 0.0
    %1049 = vmatpush1.msra.mxu0 0.0
    %1050 = vmatprep.subr.mxu0 0.0
    %1051 = vmatpush1.msra.mxu0 0.0
    %1052 = vmatprep.subr.mxu0 0.0
    %1053 = vmatpush1.msra.mxu0 0.0
    %1054 = vmatprep.subr.mxu0 0.0
    %1055 = vmatpush1.msra.mxu0 0.0
    %1056 = vmatprep.subr.mxu0 0.0
    %1057 = vmatpush1.msra.mxu0 0.0
    %1058 = vmatprep.subr.mxu0 0.0
    %1059 = vmatpush1.msra.mxu0 0.0
    %1060 = vmatprep.subr.mxu0 0.0
    %1061 = vmatpush1.msra.mxu0 0.0
    %1062 = vmatprep.subr.mxu0 0.0
    %1063 = vmatpush1.msra.mxu0 0.0
    %1064 = vmatprep.subr.mxu0 0.0
    %1065 = vmatpush1.msra.mxu0 0.0
    %1066 = vmatprep.subr.mxu0 0.0
    %1067 = vmatpush1.msra.mxu0 0.0
    %1068 = vmatprep.subr.mxu0 0.0
    %1069 = vmatpush1.msra.mxu0 0.0
    %1070 = vmatprep.subr.mxu0 0.0
    %1071 = vmatpush1.msra.mxu0 0.0
    %1072 = vmatprep.subr.mxu0 0.0
    %1073 = vmatpush1.msra.mxu0 0.0
    %1074 = vmatprep.subr.mxu0 0.0
    %1075 = vmatpush1.msra.mxu0 0.0
    %1076 = vmatprep.subr.mxu0 0.0
    %1077 = vmatpush1.msra.mxu0 0.0
    %1078 = vmatprep.subr.mxu0 0.0
    %1079 = vmatpush1.msra.mxu0 0.0
    %1080 = vmatprep.subr.mxu0 0.0
    %1081 = vmatpush1.msra.mxu0 0.0
    %1082 = vmatprep.subr.mxu0 0.0
    %1083 = vmatpush1.msra.mxu0 0.0
    %1084 = vmatprep.mubr.f32.mxu0 0.0
    %1085 = vmatmul.mubr.f32.gmra.mrb[0].mxu0 %v853
    %v1086 = vpop.f32.mrb[0].mxu0
    %v1087 = vadd.f32 %v213, %v1086
    %v1088 = vpop.f32.mrb[0].mxu0
    %1089 = vdwg.mxu0
    %v1091 = vrot.slane %v1087, 5
    %v1093 = vadd.f32 %v209, %v1091
    %v1094 = vxor.u32 %v1093, 2147483648
    %v1095 = vmul.f32 %v1094, 1.442695
    %v1096 = vpow.pop %v1095
    %v1097 = vadd.f32 %v1096, 1.0
    %v1098 = vrcp.pop %v1097
    %v1099 = vmul.f32 1.0, %v1098
    %v1101 = vrot.slane %v1099, 3
    %1103 = vrot.lane.b32.xlu0 %v1101, 64
    %v1104 = vpop.permute.xlu0 %1103
    %v1105 = vmul.f32 %v1104, %v1087
    %v1107 = vrot.slane %v1105, 5
    %v1109 = vadd.f32 %v209, %v1107
    %v1110 = vtanh.pop %v1109
    %v1111 = vsub.f32 1.0, %v1099
    %1113 = vrot.lane.b32.xlu0 %v1110, 96
    %v1114 = vpop.permute.xlu0 %1113
    %v1116 = vmul.f32 %v1111, %v1114
    %v1117 = vrot.slane %v848, 7
    %v1119 = vmul.f32 %v1099, %v1117
    %v1120 = vadd.f32 %v1116, %v1119
    %v1122 = vrot.slane %v1120, 3
    %1123 = vrot.lane.b32.xlu0 %v1122, 96
    %v1124 = vpop.permute.xlu0 %1123
    %v1125 = vsel %vm138, %v1124, 0
    %1127 = vmatprep.subr.mxu0 0.0
    %1128 = vmatpush1.msra.mxu0 %v118
    %1129 = vmatprep.subr.mxu0 0.0
    %1130 = vmatpush1.msra.mxu0 %v119
    %1131 = vmatprep.subr.mxu0 0.0
    %1132 = vmatpush1.msra.mxu0 %v120
    %1133 = vmatprep.subr.mxu0 0.0
    %1134 = vmatpush1.msra.mxu0 %v121
    %1135 = vmatprep.subr.mxu0 0.0
    %1136 = vmatpush1.msra.mxu0 0.0
    %1137 = vmatprep.subr.mxu0 0.0
    %1138 = vmatpush1.msra.mxu0 0.0
    %1139 = vmatprep.subr.mxu0 0.0
    %1140 = vmatpush1.msra.mxu0 0.0
    %1141 = vmatprep.subr.mxu0 0.0
    %1142 = vmatpush1.msra.mxu0 0.0
    %1143 = vmatprep.subr.mxu0 0.0
    %1144 = vmatpush1.msra.mxu0 0.0
    %1145 = vmatprep.subr.mxu0 0.0
    %1146 = vmatpush1.msra.mxu0 0.0
    %1147 = vmatprep.subr.mxu0 0.0
    %1148 = vmatpush1.msra.mxu0 0.0
    %1149 = vmatprep.subr.mxu0 0.0
    %1150 = vmatpush1.msra.mxu0 0.0
    %1151 = vmatprep.subr.mxu0 0.0
    %1152 = vmatpush1.msra.mxu0 0.0
    %1153 = vmatprep.subr.mxu0 0.0
    %1154 = vmatpush1.msra.mxu0 0.0
    %1155 = vmatprep.subr.mxu0 0.0
    %1156 = vmatpush1.msra.mxu0 0.0
    %1157 = vmatprep.subr.mxu0 0.0
    %1158 = vmatpush1.msra.mxu0 0.0
    %1159 = vmatprep.subr.mxu0 0.0
    %1160 = vmatpush1.msra.mxu0 0.0
    %1161 = vmatprep.subr.mxu0 0.0
    %1162 = vmatpush1.msra.mxu0 0.0
    %1163 = vmatprep.subr.mxu0 0.0
    %1164 = vmatpush1.msra.mxu0 0.0
    %1165 = vmatprep.subr.mxu0 0.0
    %1166 = vmatpush1.msra.mxu0 0.0
    %1167 = vmatprep.subr.mxu0 0.0
    %1168 = vmatpush1.msra.mxu0 0.0
    %1169 = vmatprep.subr.mxu0 0.0
    %1170 = vmatpush1.msra.mxu0 0.0
    %1171 = vmatprep.subr.mxu0 0.0
    %1172 = vmatpush1.msra.mxu0 0.0
    %1173 = vmatprep.subr.mxu0 0.0
    %1174 = vmatpush1.msra.mxu0 0.0
    %1175 = vmatprep.subr.mxu0 0.0
    %1176 = vmatpush1.msra.mxu0 0.0
    %1177 = vmatprep.subr.mxu0 0.0
    %1178 = vmatpush1.msra.mxu0 0.0
    %1179 = vmatprep.subr.mxu0 0.0
    %1180 = vmatpush1.msra.mxu0 0.0
    %1181 = vmatprep.subr.mxu0 0.0
    %1182 = vmatpush1.msra.mxu0 0.0
    %1183 = vmatprep.subr.mxu0 0.0
    %1184 = vmatpush1.msra.mxu0 0.0
    %1185 = vmatprep.subr.mxu0 0.0
    %1186 = vmatpush1.msra.mxu0 0.0
    %1187 = vmatprep.subr.mxu0 0.0
    %1188 = vmatpush1.msra.mxu0 0.0
    %1189 = vmatprep.subr.mxu0 0.0
    %1190 = vmatpush1.msra.mxu0 0.0
    %1191 = vmatprep.mubr.f32.mxu0 0.0
    %1192 = vmatmul.mubr.f32.gmra.mrb[0].mxu0 %v1125
    %v1193 = vpop.f32.mrb[0].mxu0
    %v1194 = vadd.f32 %v133, %v1193
    %v1195 = vpop.f32.mrb[0].mxu0
    %1196 = vdwg.mxu0
    %1198 = vrot.lane.b32.xlu0 %v1019, 96
    %v1199 = vpop.permute.xlu0 %1198
    %v1200 = vsel %vm138, %v1199, 0
    %1202 = vmatprep.subr.mxu0 0.0
    %1203 = vmatpush1.msra.mxu0 %v127
    %1204 = vmatprep.subr.mxu0 0.0
    %1205 = vmatpush1.msra.mxu0 %v128
    %1206 = vmatprep.subr.mxu0 0.0
    %1207 = vmatpush1.msra.mxu0 %v129
    %1208 = vmatprep.subr.mxu0 0.0
    %1209 = vmatpush1.msra.mxu0 %v130
    %1210 = vmatprep.subr.mxu0 0.0
    %1211 = vmatpush1.msra.mxu0 0.0
    %1212 = vmatprep.subr.mxu0 0.0
    %1213 = vmatpush1.msra.mxu0 0.0
    %1214 = vmatprep.subr.mxu0 0.0
    %1215 = vmatpush1.msra.mxu0 0.0
    %1216 = vmatprep.subr.mxu0 0.0
    %1217 = vmatpush1.msra.mxu0 0.0
    %1218 = vmatprep.subr.mxu0 0.0
    %1219 = vmatpush1.msra.mxu0 0.0
    %1220 = vmatprep.subr.mxu0 0.0
    %1221 = vmatpush1.msra.mxu0 0.0
    %1222 = vmatprep.subr.mxu0 0.0
    %1223 = vmatpush1.msra.mxu0 0.0
    %1224 = vmatprep.subr.mxu0 0.0
    %1225 = vmatpush1.msra.mxu0 0.0
    %1226 = vmatprep.subr.mxu0 0.0
    %1227 = vmatpush1.msra.mxu0 0.0
    %1228 = vmatprep.subr.mxu0 0.0
    %1229 = vmatpush1.msra.mxu0 0.0
    %1230 = vmatprep.subr.mxu0 0.0
    %1231 = vmatpush1.msra.mxu0 0.0
    %1232 = vmatprep.subr.mxu0 0.0
    %1233 = vmatpush1.msra.mxu0 0.0
    %1234 = vmatprep.subr.mxu0 0.0
    %1235 = vmatpush1.msra.mxu0 0.0
    %1236 = vmatprep.subr.mxu0 0.0
    %1237 = vmatpush1.msra.mxu0 0.0
    %1238 = vmatprep.subr.mxu0 0.0
    %1239 = vmatpush1.msra.mxu0 0.0
    %1240 = vmatprep.subr.mxu0 0.0
    %1241 = vmatpush1.msra.mxu0 0.0
    %1242 = vmatprep.subr.mxu0 0.0
    %1243 = vmatpush1.msra.mxu0 0.0
    %1244 = vmatprep.subr.mxu0 0.0
    %1245 = vmatpush1.msra.mxu0 0.0
    %1246 = vmatprep.subr.mxu0 0.0
    %1247 = vmatpush1.msra.mxu0 0.0
    %1248 = vmatprep.subr.mxu0 0.0
    %1249 = vmatpush1.msra.mxu0 0.0
    %1250 = vmatprep.subr.mxu0 0.0
    %1251 = vmatpush1.msra.mxu0 0.0
    %1252 = vmatprep.subr.mxu0 0.0
    %1253 = vmatpush1.msra.mxu0 0.0
    %1254 = vmatprep.subr.mxu0 0.0
    %1255 = vmatpush1.msra.mxu0 0.0
    %1256 = vmatprep.subr.mxu0 0.0
    %1257 = vmatpush1.msra.mxu0 0.0
    %1258 = vmatprep.subr.mxu0 0.0
    %1259 = vmatpush1.msra.mxu0 0.0
    %1260 = vmatprep.subr.mxu0 0.0
    %1261 = vmatpush1.msra.mxu0 0.0
    %1262 = vmatprep.subr.mxu0 0.0
    %1263 = vmatpush1.msra.mxu0 0.0
    %1264 = vmatprep.subr.mxu0 0.0
    %1265 = vmatpush1.msra.mxu0 0.0
    %1266 = vmatprep.mubr.f32.mxu0 0.0
    %1267 = vmatmul.mubr.f32.gmra.mrb[0].mxu0 %v1200
    %v1268 = vpop.f32.mrb[0].mxu0
    %v1269 = vadd.f32 %v384, %v1268
    %v1270 = vpop.f32.mrb[0].mxu0
    %1271 = vdwg.mxu0
    %v1272 = vadd.f32 %v1194, %v1269
    %v1273 = vxor.u32 %v1272, 2147483648
    %v1274 = vmul.f32 %v1273, 1.442695
    %v1275 = vpow.pop %v1274
    %v1276 = vadd.f32 %v1275, 1.0
    %v1277 = vrcp.pop %v1276
    %v1278 = vmul.f32 1.0, %v1277
    %1279 = vrot.lane.b32.xlu0 %v1278, 64
    %v1280 = vpop.permute.xlu0 %1279
    %v1281 = vmul.f32 %v1280, %v1269
    %v1282 = vadd.f32 %v1194, %v1281
    %v1283 = vtanh.pop %v1282
    %v1284 = vsub.f32 1.0, %v1278
    %1286 = vrot.lane.b32.xlu0 %v1283, 96
    %v1287 = vpop.permute.xlu0 %1286
    %v1289 = vmul.f32 %v1284, %v1287
    %v1290 = vmul.f32 %v1278, %v1019
    %v1291 = vadd.f32 %v1289, %v1290
    %1292 = vmatprep.subr.mxu0 0.0
    %1293 = vmatpush1.msra.mxu0 %v122
    %1294 = vmatprep.subr.mxu0 0.0
    %1295 = vmatpush1.msra.mxu0 %v123
    %1296 = vmatprep.subr.mxu0 0.0
    %1297 = vmatpush1.msra.mxu0 %v124
    %1298 = vmatprep.subr.mxu0 0.0
    %1299 = vmatpush1.msra.mxu0 %v125
    %1300 = vmatprep.subr.mxu0 0.0
    %1301 = vmatpush1.msra.mxu0 0.0
    %1302 = vmatprep.subr.mxu0 0.0
    %1303 = vmatpush1.msra.mxu0 0.0
    %1304 = vmatprep.subr.mxu0 0.0
    %1305 = vmatpush1.msra.mxu0 0.0
    %1306 = vmatprep.subr.mxu0 0.0
    %1307 = vmatpush1.msra.mxu0 0.0
    %1308 = vmatprep.subr.mxu0 0.0
    %1309 = vmatpush1.msra.mxu0 0.0
    %1310 = vmatprep.subr.mxu0 0.0
    %1311 = vmatpush1.msra.mxu0 0.0
    %1312 = vmatprep.subr.mxu0 0.0
    %1313 = vmatpush1.msra.mxu0 0.0
    %1314 = vmatprep.subr.mxu0 0.0
    %1315 = vmatpush1.msra.mxu0 0.0
    %1316 = vmatprep.subr.mxu0 0.0
    %1317 = vmatpush1.msra.mxu0 0.0
    %1318 = vmatprep.subr.mxu0 0.0
    %1319 = vmatpush1.msra.mxu0 0.0
    %1320 = vmatprep.subr.mxu0 0.0
    %1321 = vmatpush1.msra.mxu0 0.0
    %1322 = vmatprep.subr.mxu0 0.0
    %1323 = vmatpush1.msra.mxu0 0.0
    %1324 = vmatprep.subr.mxu0 0.0
    %1325 = vmatpush1.msra.mxu0 0.0
    %1326 = vmatprep.subr.mxu0 0.0
    %1327 = vmatpush1.msra.mxu0 0.0
    %1328 = vmatprep.subr.mxu0 0.0
    %1329 = vmatpush1.msra.mxu0 0.0
    %1330 = vmatprep.subr.mxu0 0.0
    %1331 = vmatpush1.msra.mxu0 0.0
    %1332 = vmatprep.subr.mxu0 0.0
    %1333 = vmatpush1.msra.mxu0 0.0
    %1334 = vmatprep.subr.mxu0 0.0
    %1335 = vmatpush1.msra.mxu0 0.0
    %1336 = vmatprep.subr.mxu0 0.0
    %1337 = vmatpush1.msra.mxu0 0.0
    %1338 = vmatprep.subr.mxu0 0.0
    %1339 = vmatpush1.msra.mxu0 0.0
    %1340 = vmatprep.subr.mxu0 0.0
    %1341 = vmatpush1.msra.mxu0 0.0
    %1342 = vmatprep.subr.mxu0 0.0
    %1343 = vmatpush1.msra.mxu0 0.0
    %1344 = vmatprep.subr.mxu0 0.0
    %1345 = vmatpush1.msra.mxu0 0.0
    %1346 = vmatprep.subr.mxu0 0.0
    %1347 = vmatpush1.msra.mxu0 0.0
    %1348 = vmatprep.subr.mxu0 0.0
    %1349 = vmatpush1.msra.mxu0 0.0
    %1350 = vmatprep.subr.mxu0 0.0
    %1351 = vmatpush1.msra.mxu0 0.0
    %1352 = vmatprep.subr.mxu0 0.0
    %1353 = vmatpush1.msra.mxu0 0.0
    %1354 = vmatprep.subr.mxu0 0.0
    %1355 = vmatpush1.msra.mxu0 0.0
    %1356 = vmatprep.mubr.f32.mxu0 0.0
    %1357 = vmatmul.mubr.f32.gmra.mrb[0].mxu0 %v1125
    %v1358 = vpop.f32.mrb[0].mxu0
    %v1359 = vadd.f32 %v213, %v1358
    %v1360 = vpop.f32.mrb[0].mxu0
    %1361 = vdwg.mxu0
    %v1363 = vrot.slane %v1359, 4
    %v1365 = vadd.f32 %v209, %v1363
    %v1366 = vxor.u32 %v1365, 2147483648
    %v1367 = vmul.f32 %v1366, 1.442695
    %v1368 = vpow.pop %v1367
    %v1369 = vadd.f32 %v1368, 1.0
    %v1370 = vrcp.pop %v1369
    %v1371 = vmul.f32 1.0, %v1370
    %v1373 = vrot.slane %v1371, 4
    %1375 = vrot.lane.b32.xlu0 %v1373, 64
    %v1376 = vpop.permute.xlu0 %1375
    %v1377 = vmul.f32 %v1376, %v1359
    %v1379 = vrot.slane %v1377, 4
    %v1381 = vadd.f32 %v209, %v1379
    %v1382 = vtanh.pop %v1381
    %v1383 = vsub.f32 1.0, %v1371
    %1385 = vrot.lane.b32.xlu0 %v1382, 96
    %v1386 = vpop.permute.xlu0 %1385
    %v1388 = vmul.f32 %v1383, %v1386
    %v1389 = vrot.slane %v1120, 7
    %v1391 = vmul.f32 %v1371, %v1389
    %v1392 = vadd.f32 %v1388, %v1391
    %v1394 = vrot.slane %v1392, 4
    %1395 = vrot.lane.b32.xlu0 %v1394, 96
    %v1396 = vpop.permute.xlu0 %1395
    %v1397 = vsel %vm138, %v1396, 0
    %1399 = vmatprep.subr.mxu0 0.0
    %1400 = vmatpush1.msra.mxu0 %v118
    %1401 = vmatprep.subr.mxu0 0.0
    %1402 = vmatpush1.msra.mxu0 %v119
    %1403 = vmatprep.subr.mxu0 0.0
    %1404 = vmatpush1.msra.mxu0 %v120
    %1405 = vmatprep.subr.mxu0 0.0
    %1406 = vmatpush1.msra.mxu0 %v121
    %1407 = vmatprep.subr.mxu0 0.0
    %1408 = vmatpush1.msra.mxu0 0.0
    %1409 = vmatprep.subr.mxu0 0.0
    %1410 = vmatpush1.msra.mxu0 0.0
    %1411 = vmatprep.subr.mxu0 0.0
    %1412 = vmatpush1.msra.mxu0 0.0
    %1413 = vmatprep.subr.mxu0 0.0
    %1414 = vmatpush1.msra.mxu0 0.0
    %1415 = vmatprep.subr.mxu0 0.0
    %1416 = vmatpush1.msra.mxu0 0.0
    %1417 = vmatprep.subr.mxu0 0.0
    %1418 = vmatpush1.msra.mxu0 0.0
    %1419 = vmatprep.subr.mxu0 0.0
    %1420 = vmatpush1.msra.mxu0 0.0
    %1421 = vmatprep.subr.mxu0 0.0
    %1422 = vmatpush1.msra.mxu0 0.0
    %1423 = vmatprep.subr.mxu0 0.0
    %1424 = vmatpush1.msra.mxu0 0.0
    %1425 = vmatprep.subr.mxu0 0.0
    %1426 = vmatpush1.msra.mxu0 0.0
    %1427 = vmatprep.subr.mxu0 0.0
    %1428 = vmatpush1.msra.mxu0 0.0
    %1429 = vmatprep.subr.mxu0 0.0
    %1430 = vmatpush1.msra.mxu0 0.0
    %1431 = vmatprep.subr.mxu0 0.0
    %1432 = vmatpush1.msra.mxu0 0.0
    %1433 = vmatprep.subr.mxu0 0.0
    %1434 = vmatpush1.msra.mxu0 0.0
    %1435 = vmatprep.subr.mxu0 0.0
    %1436 = vmatpush1.msra.mxu0 0.0
    %1437 = vmatprep.subr.mxu0 0.0
    %1438 = vmatpush1.msra.mxu0 0.0
    %1439 = vmatprep.subr.mxu0 0.0
    %1440 = vmatpush1.msra.mxu0 0.0
    %1441 = vmatprep.subr.mxu0 0.0
    %1442 = vmatpush1.msra.mxu0 0.0
    %1443 = vmatprep.subr.mxu0 0.0
    %1444 = vmatpush1.msra.mxu0 0.0
    %1445 = vmatprep.subr.mxu0 0.0
    %1446 = vmatpush1.msra.mxu0 0.0
    %1447 = vmatprep.subr.mxu0 0.0
    %1448 = vmatpush1.msra.mxu0 0.0
    %1449 = vmatprep.subr.mxu0 0.0
    %1450 = vmatpush1.msra.mxu0 0.0
    %1451 = vmatprep.subr.mxu0 0.0
    %1452 = vmatpush1.msra.mxu0 0.0
    %1453 = vmatprep.subr.mxu0 0.0
    %1454 = vmatpush1.msra.mxu0 0.0
    %1455 = vmatprep.subr.mxu0 0.0
    %1456 = vmatpush1.msra.mxu0 0.0
    %1457 = vmatprep.subr.mxu0 0.0
    %1458 = vmatpush1.msra.mxu0 0.0
    %1459 = vmatprep.subr.mxu0 0.0
    %1460 = vmatpush1.msra.mxu0 0.0
    %1461 = vmatprep.subr.mxu0 0.0
    %1462 = vmatpush1.msra.mxu0 0.0
    %1463 = vmatprep.mubr.f32.mxu0 0.0
    %1464 = vmatmul.mubr.f32.gmra.mrb[0].mxu0 %v1397
    %v1465 = vpop.f32.mrb[0].mxu0
    %v1466 = vadd.f32 %v133, %v1465
    %v1467 = vpop.f32.mrb[0].mxu0
    %1468 = vdwg.mxu0
    %1470 = vrot.lane.b32.xlu0 %v1291, 96
    %v1471 = vpop.permute.xlu0 %1470
    %v1472 = vsel %vm138, %v1471, 0
    %1474 = vmatprep.subr.mxu0 0.0
    %1475 = vmatpush1.msra.mxu0 %v127
    %1476 = vmatprep.subr.mxu0 0.0
    %1477 = vmatpush1.msra.mxu0 %v128
    %1478 = vmatprep.subr.mxu0 0.0
    %1479 = vmatpush1.msra.mxu0 %v129
    %1480 = vmatprep.subr.mxu0 0.0
    %1481 = vmatpush1.msra.mxu0 %v130
    %1482 = vmatprep.subr.mxu0 0.0
    %1483 = vmatpush1.msra.mxu0 0.0
    %1484 = vmatprep.subr.mxu0 0.0
    %1485 = vmatpush1.msra.mxu0 0.0
    %1486 = vmatprep.subr.mxu0 0.0
    %1487 = vmatpush1.msra.mxu0 0.0
    %1488 = vmatprep.subr.mxu0 0.0
    %1489 = vmatpush1.msra.mxu0 0.0
    %1490 = vmatprep.subr.mxu0 0.0
    %1491 = vmatpush1.msra.mxu0 0.0
    %1492 = vmatprep.subr.mxu0 0.0
    %1493 = vmatpush1.msra.mxu0 0.0
    %1494 = vmatprep.subr.mxu0 0.0
    %1495 = vmatpush1.msra.mxu0 0.0
    %1496 = vmatprep.subr.mxu0 0.0
    %1497 = vmatpush1.msra.mxu0 0.0
    %1498 = vmatprep.subr.mxu0 0.0
    %1499 = vmatpush1.msra.mxu0 0.0
    %1500 = vmatprep.subr.mxu0 0.0
    %1501 = vmatpush1.msra.mxu0 0.0
    %1502 = vmatprep.subr.mxu0 0.0
    %1503 = vmatpush1.msra.mxu0 0.0
    %1504 = vmatprep.subr.mxu0 0.0
    %1505 = vmatpush1.msra.mxu0 0.0
    %1506 = vmatprep.subr.mxu0 0.0
    %1507 = vmatpush1.msra.mxu0 0.0
    %1508 = vmatprep.subr.mxu0 0.0
    %1509 = vmatpush1.msra.mxu0 0.0
    %1510 = vmatprep.subr.mxu0 0.0
    %1511 = vmatpush1.msra.mxu0 0.0
    %1512 = vmatprep.subr.mxu0 0.0
    %1513 = vmatpush1.msra.mxu0 0.0
    %1514 = vmatprep.subr.mxu0 0.0
    %1515 = vmatpush1.msra.mxu0 0.0
    %1516 = vmatprep.subr.mxu0 0.0
    %1517 = vmatpush1.msra.mxu0 0.0
    %1518 = vmatprep.subr.mxu0 0.0
    %1519 = vmatpush1.msra.mxu0 0.0
    %1520 = vmatprep.subr.mxu0 0.0
    %1521 = vmatpush1.msra.mxu0 0.0
    %1522 = vmatprep.subr.mxu0 0.0
    %1523 = vmatpush1.msra.mxu0 0.0
    %1524 = vmatprep.subr.mxu0 0.0
    %1525 = vmatpush1.msra.mxu0 0.0
    %1526 = vmatprep.subr.mxu0 0.0
    %1527 = vmatpush1.msra.mxu0 0.0
    %1528 = vmatprep.subr.mxu0 0.0
    %1529 = vmatpush1.msra.mxu0 0.0
    %1530 = vmatprep.subr.mxu0 0.0
    %1531 = vmatpush1.msra.mxu0 0.0
    %1532 = vmatprep.subr.mxu0 0.0
    %1533 = vmatpush1.msra.mxu0 0.0
    %1534 = vmatprep.subr.mxu0 0.0
    %1535 = vmatpush1.msra.mxu0 0.0
    %1536 = vmatprep.subr.mxu0 0.0
    %1537 = vmatpush1.msra.mxu0 0.0
    %1538 = vmatprep.mubr.f32.mxu0 0.0
    %1539 = vmatmul.mubr.f32.gmra.mrb[0].mxu0 %v1472
    %v1540 = vpop.f32.mrb[0].mxu0
    %v1541 = vadd.f32 %v384, %v1540
    %v1542 = vpop.f32.mrb[0].mxu0
    %1543 = vdwg.mxu0
    %v1544 = vadd.f32 %v1466, %v1541
    %v1545 = vxor.u32 %v1544, 2147483648
    %v1546 = vmul.f32 %v1545, 1.442695
    %v1547 = vpow.pop %v1546
    %v1548 = vadd.f32 %v1547, 1.0
    %v1549 = vrcp.pop %v1548
    %v1550 = vmul.f32 1.0, %v1549
    %1551 = vrot.lane.b32.xlu0 %v1550, 64
    %v1552 = vpop.permute.xlu0 %1551
    %v1553 = vmul.f32 %v1552, %v1541
    %v1554 = vadd.f32 %v1466, %v1553
    %v1555 = vtanh.pop %v1554
    %v1556 = vsub.f32 1.0, %v1550
    %1558 = vrot.lane.b32.xlu0 %v1555, 96
    %v1559 = vpop.permute.xlu0 %1558
    %v1561 = vmul.f32 %v1556, %v1559
    %v1562 = vmul.f32 %v1550, %v1291
    %v1563 = vadd.f32 %v1561, %v1562
    %1564 = vmatprep.subr.mxu0 0.0
    %1565 = vmatpush1.msra.mxu0 %v122
    %1566 = vmatprep.subr.mxu0 0.0
    %1567 = vmatpush1.msra.mxu0 %v123
    %1568 = vmatprep.subr.mxu0 0.0
    %1569 = vmatpush1.msra.mxu0 %v124
    %1570 = vmatprep.subr.mxu0 0.0
    %1571 = vmatpush1.msra.mxu0 %v125
    %1572 = vmatprep.subr.mxu0 0.0
    %1573 = vmatpush1.msra.mxu0 0.0
    %1574 = vmatprep.subr.mxu0 0.0
    %1575 = vmatpush1.msra.mxu0 0.0
    %1576 = vmatprep.subr.mxu0 0.0
    %1577 = vmatpush1.msra.mxu0 0.0
    %1578 = vmatprep.subr.mxu0 0.0
    %1579 = vmatpush1.msra.mxu0 0.0
    %1580 = vmatprep.subr.mxu0 0.0
    %1581 = vmatpush1.msra.mxu0 0.0
    %1582 = vmatprep.subr.mxu0 0.0
    %1583 = vmatpush1.msra.mxu0 0.0
    %1584 = vmatprep.subr.mxu0 0.0
    %1585 = vmatpush1.msra.mxu0 0.0
    %1586 = vmatprep.subr.mxu0 0.0
    %1587 = vmatpush1.msra.mxu0 0.0
    %1588 = vmatprep.subr.mxu0 0.0
    %1589 = vmatpush1.msra.mxu0 0.0
    %1590 = vmatprep.subr.mxu0 0.0
    %1591 = vmatpush1.msra.mxu0 0.0
    %1592 = vmatprep.subr.mxu0 0.0
    %1593 = vmatpush1.msra.mxu0 0.0
    %1594 = vmatprep.subr.mxu0 0.0
    %1595 = vmatpush1.msra.mxu0 0.0
    %1596 = vmatprep.subr.mxu0 0.0
    %1597 = vmatpush1.msra.mxu0 0.0
    %1598 = vmatprep.subr.mxu0 0.0
    %1599 = vmatpush1.msra.mxu0 0.0
    %1600 = vmatprep.subr.mxu0 0.0
    %1601 = vmatpush1.msra.mxu0 0.0
    %1602 = vmatprep.subr.mxu0 0.0
    %1603 = vmatpush1.msra.mxu0 0.0
    %1604 = vmatprep.subr.mxu0 0.0
    %1605 = vmatpush1.msra.mxu0 0.0
    %1606 = vmatprep.subr.mxu0 0.0
    %1607 = vmatpush1.msra.mxu0 0.0
    %1608 = vmatprep.subr.mxu0 0.0
    %1609 = vmatpush1.msra.mxu0 0.0
    %1610 = vmatprep.subr.mxu0 0.0
    %1611 = vmatpush1.msra.mxu0 0.0
    %1612 = vmatprep.subr.mxu0 0.0
    %1613 = vmatpush1.msra.mxu0 0.0
    %1614 = vmatprep.subr.mxu0 0.0
    %1615 = vmatpush1.msra.mxu0 0.0
    %1616 = vmatprep.subr.mxu0 0.0
    %1617 = vmatpush1.msra.mxu0 0.0
    %1618 = vmatprep.subr.mxu0 0.0
    %1619 = vmatpush1.msra.mxu0 0.0
    %1620 = vmatprep.subr.mxu0 0.0
    %1621 = vmatpush1.msra.mxu0 0.0
    %1622 = vmatprep.subr.mxu0 0.0
    %1623 = vmatpush1.msra.mxu0 0.0
    %1624 = vmatprep.subr.mxu0 0.0
    %1625 = vmatpush1.msra.mxu0 0.0
    %1626 = vmatprep.subr.mxu0 0.0
    %1627 = vmatpush1.msra.mxu0 0.0
    %1628 = vmatprep.mubr.f32.mxu0 0.0
    %1629 = vmatmul.mubr.f32.gmra.mrb[0].mxu0 %v1397
    %v1630 = vpop.f32.mrb[0].mxu0
    %v1631 = vadd.f32 %v213, %v1630
    %v1632 = vpop.f32.mrb[0].mxu0
    %1633 = vdwg.mxu0
    %v1635 = vrot.slane %v1631, 3
    %v1637 = vadd.f32 %v209, %v1635
    %v1638 = vxor.u32 %v1637, 2147483648
    %v1639 = vmul.f32 %v1638, 1.442695
    %v1640 = vpow.pop %v1639
    %v1641 = vadd.f32 %v1640, 1.0
    %v1642 = vrcp.pop %v1641
    %v1643 = vmul.f32 1.0, %v1642
    %v1645 = vrot.slane %v1643, 5
    %1647 = vrot.lane.b32.xlu0 %v1645, 64
    %v1648 = vpop.permute.xlu0 %1647
    %v1649 = vmul.f32 %v1648, %v1631
    %v1651 = vrot.slane %v1649, 3
    %v1653 = vadd.f32 %v209, %v1651
    %v1654 = vtanh.pop %v1653
    %v1655 = vsub.f32 1.0, %v1643
    %1657 = vrot.lane.b32.xlu0 %v1654, 96
    %v1658 = vpop.permute.xlu0 %1657
    %v1660 = vmul.f32 %v1655, %v1658
    %v1661 = vrot.slane %v1392, 7
    %v1663 = vmul.f32 %v1643, %v1661
    %v1664 = vadd.f32 %v1660, %v1663
    %v1666 = vrot.slane %v1664, 5
    %1667 = vrot.lane.b32.xlu0 %v1666, 96
    %v1668 = vpop.permute.xlu0 %1667
    %v1669 = vsel %vm138, %v1668, 0
    %1671 = vmatprep.subr.mxu0 0.0
    %1672 = vmatpush1.msra.mxu0 %v118
    %1673 = vmatprep.subr.mxu0 0.0
    %1674 = vmatpush1.msra.mxu0 %v119
    %1675 = vmatprep.subr.mxu0 0.0
    %1676 = vmatpush1.msra.mxu0 %v120
    %1677 = vmatprep.subr.mxu0 0.0
    %1678 = vmatpush1.msra.mxu0 %v121
    %1679 = vmatprep.subr.mxu0 0.0
    %1680 = vmatpush1.msra.mxu0 0.0
    %1681 = vmatprep.subr.mxu0 0.0
    %1682 = vmatpush1.msra.mxu0 0.0
    %1683 = vmatprep.subr.mxu0 0.0
    %1684 = vmatpush1.msra.mxu0 0.0
    %1685 = vmatprep.subr.mxu0 0.0
    %1686 = vmatpush1.msra.mxu0 0.0
    %1687 = vmatprep.subr.mxu0 0.0
    %1688 = vmatpush1.msra.mxu0 0.0
    %1689 = vmatprep.subr.mxu0 0.0
    %1690 = vmatpush1.msra.mxu0 0.0
    %1691 = vmatprep.subr.mxu0 0.0
    %1692 = vmatpush1.msra.mxu0 0.0
    %1693 = vmatprep.subr.mxu0 0.0
    %1694 = vmatpush1.msra.mxu0 0.0
    %1695 = vmatprep.subr.mxu0 0.0
    %1696 = vmatpush1.msra.mxu0 0.0
    %1697 = vmatprep.subr.mxu0 0.0
    %1698 = vmatpush1.msra.mxu0 0.0
    %1699 = vmatprep.subr.mxu0 0.0
    %1700 = vmatpush1.msra.mxu0 0.0
    %1701 = vmatprep.subr.mxu0 0.0
    %1702 = vmatpush1.msra.mxu0 0.0
    %1703 = vmatprep.subr.mxu0 0.0
    %1704 = vmatpush1.msra.mxu0 0.0
    %1705 = vmatprep.subr.mxu0 0.0
    %1706 = vmatpush1.msra.mxu0 0.0
    %1707 = vmatprep.subr.mxu0 0.0
    %1708 = vmatpush1.msra.mxu0 0.0
    %1709 = vmatprep.subr.mxu0 0.0
    %1710 = vmatpush1.msra.mxu0 0.0
    %1711 = vmatprep.subr.mxu0 0.0
    %1712 = vmatpush1.msra.mxu0 0.0
    %1713 = vmatprep.subr.mxu0 0.0
    %1714 = vmatpush1.msra.mxu0 0.0
    %1715 = vmatprep.subr.mxu0 0.0
    %1716 = vmatpush1.msra.mxu0 0.0
    %1717 = vmatprep.subr.mxu0 0.0
    %1718 = vmatpush1.msra.mxu0 0.0
    %1719 = vmatprep.subr.mxu0 0.0
    %1720 = vmatpush1.msra.mxu0 0.0
    %1721 = vmatprep.subr.mxu0 0.0
    %1722 = vmatpush1.msra.mxu0 0.0
    %1723 = vmatprep.subr.mxu0 0.0
    %1724 = vmatpush1.msra.mxu0 0.0
    %1725 = vmatprep.subr.mxu0 0.0
    %1726 = vmatpush1.msra.mxu0 0.0
    %1727 = vmatprep.subr.mxu0 0.0
    %1728 = vmatpush1.msra.mxu0 0.0
    %1729 = vmatprep.subr.mxu0 0.0
    %1730 = vmatpush1.msra.mxu0 0.0
    %1731 = vmatprep.subr.mxu0 0.0
    %1732 = vmatpush1.msra.mxu0 0.0
    %1733 = vmatprep.subr.mxu0 0.0
    %1734 = vmatpush1.msra.mxu0 0.0
    %1735 = vmatprep.mubr.f32.mxu0 0.0
    %1736 = vmatmul.mubr.f32.gmra.mrb[0].mxu0 %v1669
    %v1737 = vpop.f32.mrb[0].mxu0
    %v1738 = vadd.f32 %v133, %v1737
    %v1739 = vpop.f32.mrb[0].mxu0
    %1740 = vdwg.mxu0
    %1742 = vrot.lane.b32.xlu0 %v1563, 96
    %v1743 = vpop.permute.xlu0 %1742
    %v1744 = vsel %vm138, %v1743, 0
    %1746 = vmatprep.subr.mxu0 0.0
    %1747 = vmatpush1.msra.mxu0 %v127
    %1748 = vmatprep.subr.mxu0 0.0
    %1749 = vmatpush1.msra.mxu0 %v128
    %1750 = vmatprep.subr.mxu0 0.0
    %1751 = vmatpush1.msra.mxu0 %v129
    %1752 = vmatprep.subr.mxu0 0.0
    %1753 = vmatpush1.msra.mxu0 %v130
    %1754 = vmatprep.subr.mxu0 0.0
    %1755 = vmatpush1.msra.mxu0 0.0
    %1756 = vmatprep.subr.mxu0 0.0
    %1757 = vmatpush1.msra.mxu0 0.0
    %1758 = vmatprep.subr.mxu0 0.0
    %1759 = vmatpush1.msra.mxu0 0.0
    %1760 = vmatprep.subr.mxu0 0.0
    %1761 = vmatpush1.msra.mxu0 0.0
    %1762 = vmatprep.subr.mxu0 0.0
    %1763 = vmatpush1.msra.mxu0 0.0
    %1764 = vmatprep.subr.mxu0 0.0
    %1765 = vmatpush1.msra.mxu0 0.0
    %1766 = vmatprep.subr.mxu0 0.0
    %1767 = vmatpush1.msra.mxu0 0.0
    %1768 = vmatprep.subr.mxu0 0.0
    %1769 = vmatpush1.msra.mxu0 0.0
    %1770 = vmatprep.subr.mxu0 0.0
    %1771 = vmatpush1.msra.mxu0 0.0
    %1772 = vmatprep.subr.mxu0 0.0
    %1773 = vmatpush1.msra.mxu0 0.0
    %1774 = vmatprep.subr.mxu0 0.0
    %1775 = vmatpush1.msra.mxu0 0.0
    %1776 = vmatprep.subr.mxu0 0.0
    %1777 = vmatpush1.msra.mxu0 0.0
    %1778 = vmatprep.subr.mxu0 0.0
    %1779 = vmatpush1.msra.mxu0 0.0
    %1780 = vmatprep.subr.mxu0 0.0
    %1781 = vmatpush1.msra.mxu0 0.0
    %1782 = vmatprep.subr.mxu0 0.0
    %1783 = vmatpush1.msra.mxu0 0.0
    %1784 = vmatprep.subr.mxu0 0.0
    %1785 = vmatpush1.msra.mxu0 0.0
    %1786 = vmatprep.subr.mxu0 0.0
    %1787 = vmatpush1.msra.mxu0 0.0
    %1788 = vmatprep.subr.mxu0 0.0
    %1789 = vmatpush1.msra.mxu0 0.0
    %1790 = vmatprep.subr.mxu0 0.0
    %1791 = vmatpush1.msra.mxu0 0.0
    %1792 = vmatprep.subr.mxu0 0.0
    %1793 = vmatpush1.msra.mxu0 0.0
    %1794 = vmatprep.subr.mxu0 0.0
    %1795 = vmatpush1.msra.mxu0 0.0
    %1796 = vmatprep.subr.mxu0 0.0
    %1797 = vmatpush1.msra.mxu0 0.0
    %1798 = vmatprep.subr.mxu0 0.0
    %1799 = vmatpush1.msra.mxu0 0.0
    %1800 = vmatprep.subr.mxu0 0.0
    %1801 = vmatpush1.msra.mxu0 0.0
    %1802 = vmatprep.subr.mxu0 0.0
    %1803 = vmatpush1.msra.mxu0 0.0
    %1804 = vmatprep.subr.mxu0 0.0
    %1805 = vmatpush1.msra.mxu0 0.0
    %1806 = vmatprep.subr.mxu0 0.0
    %1807 = vmatpush1.msra.mxu0 0.0
    %1808 = vmatprep.subr.mxu0 0.0
    %1809 = vmatpush1.msra.mxu0 0.0
    %1810 = vmatprep.mubr.f32.mxu0 0.0
    %1811 = vmatmul.mubr.f32.gmra.mrb[0].mxu0 %v1744
    %v1812 = vpop.f32.mrb[0].mxu0
    %v1813 = vadd.f32 %v384, %v1812
    %v1814 = vpop.f32.mrb[0].mxu0
    %1815 = vdwg.mxu0
    %v1816 = vadd.f32 %v1738, %v1813
    %v1817 = vxor.u32 %v1816, 2147483648
    %v1818 = vmul.f32 %v1817, 1.442695
    %v1819 = vpow.pop %v1818
    %v1820 = vadd.f32 %v1819, 1.0
    %v1821 = vrcp.pop %v1820
    %v1822 = vmul.f32 1.0, %v1821
    %1823 = vrot.lane.b32.xlu0 %v1822, 64
    %v1824 = vpop.permute.xlu0 %1823
    %v1825 = vmul.f32 %v1824, %v1813
    %v1826 = vadd.f32 %v1738, %v1825
    %v1827 = vtanh.pop %v1826
    %v1828 = vsub.f32 1.0, %v1822
    %1830 = vrot.lane.b32.xlu0 %v1827, 96
    %v1831 = vpop.permute.xlu0 %1830
    %v1833 = vmul.f32 %v1828, %v1831
    %v1834 = vmul.f32 %v1822, %v1563
    %v1835 = vadd.f32 %v1833, %v1834
    %1836 = vmatprep.subr.mxu0 0.0
    %1837 = vmatpush1.msra.mxu0 %v122
    %1838 = vmatprep.subr.mxu0 0.0
    %1839 = vmatpush1.msra.mxu0 %v123
    %1840 = vmatprep.subr.mxu0 0.0
    %1841 = vmatpush1.msra.mxu0 %v124
    %1842 = vmatprep.subr.mxu0 0.0
    %1843 = vmatpush1.msra.mxu0 %v125
    %1844 = vmatprep.subr.mxu0 0.0
    %1845 = vmatpush1.msra.mxu0 0.0
    %1846 = vmatprep.subr.mxu0 0.0
    %1847 = vmatpush1.msra.mxu0 0.0
    %1848 = vmatprep.subr.mxu0 0.0
    %1849 = vmatpush1.msra.mxu0 0.0
    %1850 = vmatprep.subr.mxu0 0.0
    %1851 = vmatpush1.msra.mxu0 0.0
    %1852 = vmatprep.subr.mxu0 0.0
    %1853 = vmatpush1.msra.mxu0 0.0
    %1854 = vmatprep.subr.mxu0 0.0
    %1855 = vmatpush1.msra.mxu0 0.0
    %1856 = vmatprep.subr.mxu0 0.0
    %1857 = vmatpush1.msra.mxu0 0.0
    %1858 = vmatprep.subr.mxu0 0.0
    %1859 = vmatpush1.msra.mxu0 0.0
    %1860 = vmatprep.subr.mxu0 0.0
    %1861 = vmatpush1.msra.mxu0 0.0
    %1862 = vmatprep.subr.mxu0 0.0
    %1863 = vmatpush1.msra.mxu0 0.0
    %1864 = vmatprep.subr.mxu0 0.0
    %1865 = vmatpush1.msra.mxu0 0.0
    %1866 = vmatprep.subr.mxu0 0.0
    %1867 = vmatpush1.msra.mxu0 0.0
    %1868 = vmatprep.subr.mxu0 0.0
    %1869 = vmatpush1.msra.mxu0 0.0
    %1870 = vmatprep.subr.mxu0 0.0
    %1871 = vmatpush1.msra.mxu0 0.0
    %1872 = vmatprep.subr.mxu0 0.0
    %1873 = vmatpush1.msra.mxu0 0.0
    %1874 = vmatprep.subr.mxu0 0.0
    %1875 = vmatpush1.msra.mxu0 0.0
    %1876 = vmatprep.subr.mxu0 0.0
    %1877 = vmatpush1.msra.mxu0 0.0
    %1878 = vmatprep.subr.mxu0 0.0
    %1879 = vmatpush1.msra.mxu0 0.0
    %1880 = vmatprep.subr.mxu0 0.0
    %1881 = vmatpush1.msra.mxu0 0.0
    %1882 = vmatprep.subr.mxu0 0.0
    %1883 = vmatpush1.msra.mxu0 0.0
    %1884 = vmatprep.subr.mxu0 0.0
    %1885 = vmatpush1.msra.mxu0 0.0
    %1886 = vmatprep.subr.mxu0 0.0
    %1887 = vmatpush1.msra.mxu0 0.0
    %1888 = vmatprep.subr.mxu0 0.0
    %1889 = vmatpush1.msra.mxu0 0.0
    %1890 = vmatprep.subr.mxu0 0.0
    %1891 = vmatpush1.msra.mxu0 0.0
    %1892 = vmatprep.subr.mxu0 0.0
    %1893 = vmatpush1.msra.mxu0 0.0
    %1894 = vmatprep.subr.mxu0 0.0
    %1895 = vmatpush1.msra.mxu0 0.0
    %1896 = vmatprep.subr.mxu0 0.0
    %1897 = vmatpush1.msra.mxu0 0.0
    %1898 = vmatprep.subr.mxu0 0.0
    %1899 = vmatpush1.msra.mxu0 0.0
    %1900 = vmatprep.mubr.f32.mxu0 0.0
    %1901 = vmatmul.mubr.f32.gmra.mrb[0].mxu0 %v1669
    %v1902 = vpop.f32.mrb[0].mxu0
    %v1903 = vadd.f32 %v213, %v1902
    %v1904 = vpop.f32.mrb[0].mxu0
    %1905 = vdwg.mxu0
    %v1907 = vrot.slane %v1903, 2
    %v1909 = vadd.f32 %v209, %v1907
    %v1910 = vxor.u32 %v1909, 2147483648
    %v1911 = vmul.f32 %v1910, 1.442695
    %v1912 = vpow.pop %v1911
    %v1913 = vadd.f32 %v1912, 1.0
    %v1914 = vrcp.pop %v1913
    %v1915 = vmul.f32 1.0, %v1914
    %v1917 = vrot.slane %v1915, 6
    %1919 = vrot.lane.b32.xlu0 %v1917, 64
    %v1920 = vpop.permute.xlu0 %1919
    %v1921 = vmul.f32 %v1920, %v1903
    %v1923 = vrot.slane %v1921, 2
    %v1925 = vadd.f32 %v209, %v1923
    %v1926 = vtanh.pop %v1925
    %v1927 = vsub.f32 1.0, %v1915
    %1929 = vrot.lane.b32.xlu0 %v1926, 96
    %v1930 = vpop.permute.xlu0 %1929
    %v1932 = vmul.f32 %v1927, %v1930
    %v1933 = vrot.slane %v1664, 7
    %v1935 = vmul.f32 %v1915, %v1933
    %v1936 = vadd.f32 %v1932, %v1935
    %v1938 = vrot.slane %v1936, 6
    %1939 = vrot.lane.b32.xlu0 %v1938, 96
    %v1940 = vpop.permute.xlu0 %1939
    %v1941 = vsel %vm138, %v1940, 0
    %1943 = vmatprep.subr.mxu0 0.0
    %1944 = vmatpush1.msra.mxu0 %v118
    %1945 = vmatprep.subr.mxu0 0.0
    %1946 = vmatpush1.msra.mxu0 %v119
    %1947 = vmatprep.subr.mxu0 0.0
    %1948 = vmatpush1.msra.mxu0 %v120
    %1949 = vmatprep.subr.mxu0 0.0
    %1950 = vmatpush1.msra.mxu0 %v121
    %1951 = vmatprep.subr.mxu0 0.0
    %1952 = vmatpush1.msra.mxu0 0.0
    %1953 = vmatprep.subr.mxu0 0.0
    %1954 = vmatpush1.msra.mxu0 0.0
    %1955 = vmatprep.subr.mxu0 0.0
    %1956 = vmatpush1.msra.mxu0 0.0
    %1957 = vmatprep.subr.mxu0 0.0
    %1958 = vmatpush1.msra.mxu0 0.0
    %1959 = vmatprep.subr.mxu0 0.0
    %1960 = vmatpush1.msra.mxu0 0.0
    %1961 = vmatprep.subr.mxu0 0.0
    %1962 = vmatpush1.msra.mxu0 0.0
    %1963 = vmatprep.subr.mxu0 0.0
    %1964 = vmatpush1.msra.mxu0 0.0
    %1965 = vmatprep.subr.mxu0 0.0
    %1966 = vmatpush1.msra.mxu0 0.0
    %1967 = vmatprep.subr.mxu0 0.0
    %1968 = vmatpush1.msra.mxu0 0.0
    %1969 = vmatprep.subr.mxu0 0.0
    %1970 = vmatpush1.msra.mxu0 0.0
    %1971 = vmatprep.subr.mxu0 0.0
    %1972 = vmatpush1.msra.mxu0 0.0
    %1973 = vmatprep.subr.mxu0 0.0
    %1974 = vmatpush1.msra.mxu0 0.0
    %1975 = vmatprep.subr.mxu0 0.0
    %1976 = vmatpush1.msra.mxu0 0.0
    %1977 = vmatprep.subr.mxu0 0.0
    %1978 = vmatpush1.msra.mxu0 0.0
    %1979 = vmatprep.subr.mxu0 0.0
    %1980 = vmatpush1.msra.mxu0 0.0
    %1981 = vmatprep.subr.mxu0 0.0
    %1982 = vmatpush1.msra.mxu0 0.0
    %1983 = vmatprep.subr.mxu0 0.0
    %1984 = vmatpush1.msra.mxu0 0.0
    %1985 = vmatprep.subr.mxu0 0.0
    %1986 = vmatpush1.msra.mxu0 0.0
    %1987 = vmatprep.subr.mxu0 0.0
    %1988 = vmatpush1.msra.mxu0 0.0
    %1989 = vmatprep.subr.mxu0 0.0
    %1990 = vmatpush1.msra.mxu0 0.0
    %1991 = vmatprep.subr.mxu0 0.0
    %1992 = vmatpush1.msra.mxu0 0.0
    %1993 = vmatprep.subr.mxu0 0.0
    %1994 = vmatpush1.msra.mxu0 0.0
    %1995 = vmatprep.subr.mxu0 0.0
    %1996 = vmatpush1.msra.mxu0 0.0
    %1997 = vmatprep.subr.mxu0 0.0
    %1998 = vmatpush1.msra.mxu0 0.0
    %1999 = vmatprep.subr.mxu0 0.0
    %2000 = vmatpush1.msra.mxu0 0.0
    %2001 = vmatprep.subr.mxu0 0.0
    %2002 = vmatpush1.msra.mxu0 0.0
    %2003 = vmatprep.subr.mxu0 0.0
    %2004 = vmatpush1.msra.mxu0 0.0
    %2005 = vmatprep.subr.mxu0 0.0
    %2006 = vmatpush1.msra.mxu0 0.0
    %2007 = vmatprep.mubr.f32.mxu0 0.0
    %2008 = vmatmul.mubr.f32.gmra.mrb[0].mxu0 %v1941
    %v2009 = vpop.f32.mrb[0].mxu0
    %v2010 = vadd.f32 %v133, %v2009
    %v2011 = vpop.f32.mrb[0].mxu0
    %2012 = vdwg.mxu0
    %2014 = vrot.lane.b32.xlu0 %v1835, 96
    %v2015 = vpop.permute.xlu0 %2014
    %v2016 = vsel %vm138, %v2015, 0
    %2018 = vmatprep.subr.mxu0 0.0
    %2019 = vmatpush1.msra.mxu0 %v127
    %2020 = vmatprep.subr.mxu0 0.0
    %2021 = vmatpush1.msra.mxu0 %v128
    %2022 = vmatprep.subr.mxu0 0.0
    %2023 = vmatpush1.msra.mxu0 %v129
    %2024 = vmatprep.subr.mxu0 0.0
    %2025 = vmatpush1.msra.mxu0 %v130
    %2026 = vmatprep.subr.mxu0 0.0
    %2027 = vmatpush1.msra.mxu0 0.0
    %2028 = vmatprep.subr.mxu0 0.0
    %2029 = vmatpush1.msra.mxu0 0.0
    %2030 = vmatprep.subr.mxu0 0.0
    %2031 = vmatpush1.msra.mxu0 0.0
    %2032 = vmatprep.subr.mxu0 0.0
    %2033 = vmatpush1.msra.mxu0 0.0
    %2034 = vmatprep.subr.mxu0 0.0
    %2035 = vmatpush1.msra.mxu0 0.0
    %2036 = vmatprep.subr.mxu0 0.0
    %2037 = vmatpush1.msra.mxu0 0.0
    %2038 = vmatprep.subr.mxu0 0.0
    %2039 = vmatpush1.msra.mxu0 0.0
    %2040 = vmatprep.subr.mxu0 0.0
    %2041 = vmatpush1.msra.mxu0 0.0
    %2042 = vmatprep.subr.mxu0 0.0
    %2043 = vmatpush1.msra.mxu0 0.0
    %2044 = vmatprep.subr.mxu0 0.0
    %2045 = vmatpush1.msra.mxu0 0.0
    %2046 = vmatprep.subr.mxu0 0.0
    %2047 = vmatpush1.msra.mxu0 0.0
    %2048 = vmatprep.subr.mxu0 0.0
    %2049 = vmatpush1.msra.mxu0 0.0
    %2050 = vmatprep.subr.mxu0 0.0
    %2051 = vmatpush1.msra.mxu0 0.0
    %2052 = vmatprep.subr.mxu0 0.0
    %2053 = vmatpush1.msra.mxu0 0.0
    %2054 = vmatprep.subr.mxu0 0.0
    %2055 = vmatpush1.msra.mxu0 0.0
    %2056 = vmatprep.subr.mxu0 0.0
    %2057 = vmatpush1.msra.mxu0 0.0
    %2058 = vmatprep.subr.mxu0 0.0
    %2059 = vmatpush1.msra.mxu0 0.0
    %2060 = vmatprep.subr.mxu0 0.0
    %2061 = vmatpush1.msra.mxu0 0.0
    %2062 = vmatprep.subr.mxu0 0.0
    %2063 = vmatpush1.msra.mxu0 0.0
    %2064 = vmatprep.subr.mxu0 0.0
    %2065 = vmatpush1.msra.mxu0 0.0
    %2066 = vmatprep.subr.mxu0 0.0
    %2067 = vmatpush1.msra.mxu0 0.0
    %2068 = vmatprep.subr.mxu0 0.0
    %2069 = vmatpush1.msra.mxu0 0.0
    %2070 = vmatprep.subr.mxu0 0.0
    %2071 = vmatpush1.msra.mxu0 0.0
    %2072 = vmatprep.subr.mxu0 0.0
    %2073 = vmatpush1.msra.mxu0 0.0
    %2074 = vmatprep.subr.mxu0 0.0
    %2075 = vmatpush1.msra.mxu0 0.0
    %2076 = vmatprep.subr.mxu0 0.0
    %2077 = vmatpush1.msra.mxu0 0.0
    %2078 = vmatprep.subr.mxu0 0.0
    %2079 = vmatpush1.msra.mxu0 0.0
    %2080 = vmatprep.subr.mxu0 0.0
    %2081 = vmatpush1.msra.mxu0 0.0
    %2082 = vmatprep.mubr.f32.mxu0 0.0
    %2083 = vmatmul.mubr.f32.gmra.mrb[0].mxu0 %v2016
    %v2084 = vpop.f32.mrb[0].mxu0
    %v2085 = vadd.f32 %v384, %v2084
    %v2086 = vpop.f32.mrb[0].mxu0
    %2087 = vdwg.mxu0
    %v2088 = vadd.f32 %v2010, %v2085
    %v2089 = vxor.u32 %v2088, 2147483648
    %v2090 = vmul.f32 %v2089, 1.442695
    %v2091 = vpow.pop %v2090
    %v2092 = vadd.f32 %v2091, 1.0
    %v2093 = vrcp.pop %v2092
    %v2094 = vmul.f32 1.0, %v2093
    %2095 = vrot.lane.b32.xlu0 %v2094, 64
    %v2096 = vpop.permute.xlu0 %2095
    %v2097 = vmul.f32 %v2096, %v2085
    %v2098 = vadd.f32 %v2010, %v2097
    %v2099 = vtanh.pop %v2098
    %v2100 = vsub.f32 1.0, %v2094
    %2102 = vrot.lane.b32.xlu0 %v2099, 96
    %v2103 = vpop.permute.xlu0 %2102
    %v2105 = vmul.f32 %v2100, %v2103
    %v2106 = vmul.f32 %v2094, %v1835
    %v2107 = vadd.f32 %v2105, %v2106
    %2108 = vmatprep.subr.mxu0 0.0
    %2109 = vmatpush1.msra.mxu0 %v122
    %2110 = vmatprep.subr.mxu0 0.0
    %2111 = vmatpush1.msra.mxu0 %v123
    %2112 = vmatprep.subr.mxu0 0.0
    %2113 = vmatpush1.msra.mxu0 %v124
    %2114 = vmatprep.subr.mxu0 0.0
    %2115 = vmatpush1.msra.mxu0 %v125
    %2116 = vmatprep.subr.mxu0 0.0
    %2117 = vmatpush1.msra.mxu0 0.0
    %2118 = vmatprep.subr.mxu0 0.0
    %2119 = vmatpush1.msra.mxu0 0.0
    %2120 = vmatprep.subr.mxu0 0.0
    %2121 = vmatpush1.msra.mxu0 0.0
    %2122 = vmatprep.subr.mxu0 0.0
    %2123 = vmatpush1.msra.mxu0 0.0
    %2124 = vmatprep.subr.mxu0 0.0
    %2125 = vmatpush1.msra.mxu0 0.0
    %2126 = vmatprep.subr.mxu0 0.0
    %2127 = vmatpush1.msra.mxu0 0.0
    %2128 = vmatprep.subr.mxu0 0.0
    %2129 = vmatpush1.msra.mxu0 0.0
    %2130 = vmatprep.subr.mxu0 0.0
    %2131 = vmatpush1.msra.mxu0 0.0
    %2132 = vmatprep.subr.mxu0 0.0
    %2133 = vmatpush1.msra.mxu0 0.0
    %2134 = vmatprep.subr.mxu0 0.0
    %2135 = vmatpush1.msra.mxu0 0.0
    %2136 = vmatprep.subr.mxu0 0.0
    %2137 = vmatpush1.msra.mxu0 0.0
    %2138 = vmatprep.subr.mxu0 0.0
    %2139 = vmatpush1.msra.mxu0 0.0
    %2140 = vmatprep.subr.mxu0 0.0
    %2141 = vmatpush1.msra.mxu0 0.0
    %2142 = vmatprep.subr.mxu0 0.0
    %2143 = vmatpush1.msra.mxu0 0.0
    %2144 = vmatprep.subr.mxu0 0.0
    %2145 = vmatpush1.msra.mxu0 0.0
    %2146 = vmatprep.subr.mxu0 0.0
    %2147 = vmatpush1.msra.mxu0 0.0
    %2148 = vmatprep.subr.mxu0 0.0
    %2149 = vmatpush1.msra.mxu0 0.0
    %2150 = vmatprep.subr.mxu0 0.0
    %2151 = vmatpush1.msra.mxu0 0.0
    %2152 = vmatprep.subr.mxu0 0.0
    %2153 = vmatpush1.msra.mxu0 0.0
    %2154 = vmatprep.subr.mxu0 0.0
    %2155 = vmatpush1.msra.mxu0 0.0
    %2156 = vmatprep.subr.mxu0 0.0
    %2157 = vmatpush1.msra.mxu0 0.0
    %2158 = vmatprep.subr.mxu0 0.0
    %2159 = vmatpush1.msra.mxu0 0.0
    %2160 = vmatprep.subr.mxu0 0.0
    %2161 = vmatpush1.msra.mxu0 0.0
    %2162 = vmatprep.subr.mxu0 0.0
    %2163 = vmatpush1.msra.mxu0 0.0
    %2164 = vmatprep.subr.mxu0 0.0
    %2165 = vmatpush1.msra.mxu0 0.0
    %2166 = vmatprep.subr.mxu0 0.0
    %2167 = vmatpush1.msra.mxu0 0.0
    %2168 = vmatprep.subr.mxu0 0.0
    %2169 = vmatpush1.msra.mxu0 0.0
    %2170 = vmatprep.subr.mxu0 0.0
    %2171 = vmatpush1.msra.mxu0 0.0
    %2172 = vmatprep.mubr.f32.mxu0 0.0
    %2173 = vmatmul.mubr.f32.gmra.mrb[0].mxu0 %v1941
    %v2174 = vpop.f32.mrb[0].mxu0
    %v2175 = vadd.f32 %v213, %v2174
    %v2176 = vpop.f32.mrb[0].mxu0
    %2177 = vdwg.mxu0
    %v2179 = vrot.slane %v2175, 1
    %v2181 = vadd.f32 %v209, %v2179
    %v2182 = vxor.u32 %v2181, 2147483648
    %v2183 = vmul.f32 %v2182, 1.442695
    %v2184 = vpow.pop %v2183
    %v2185 = vadd.f32 %v2184, 1.0
    %v2186 = vrcp.pop %v2185
    %v2187 = vmul.f32 1.0, %v2186
    %v2189 = vrot.slane %v2187, 7
    %2191 = vrot.lane.b32.xlu0 %v2189, 64
    %v2192 = vpop.permute.xlu0 %2191
    %v2193 = vmul.f32 %v2192, %v2175
    %v2195 = vrot.slane %v2193, 1
    %v2197 = vadd.f32 %v209, %v2195
    %v2198 = vtanh.pop %v2197
    %v2199 = vsub.f32 1.0, %v2187
    %2201 = vrot.lane.b32.xlu0 %v2198, 96
    %v2202 = vpop.permute.xlu0 %2201
    %v2204 = vmul.f32 %v2199, %v2202
    %v2205 = vrot.slane %v1936, 7
    %v2207 = vmul.f32 %v2187, %v2205
    %v2208 = vadd.f32 %v2204, %v2207
    %v2210 = vrot.slane %v2208, 7
    %2211 = vrot.lane.b32.xlu0 %v2210, 96
    %v2212 = vpop.permute.xlu0 %2211
    %v2213 = vsel %vm138, %v2212, 0
    %2215 = vmatprep.subr.mxu0 0.0
    %2216 = vmatpush1.msra.mxu0 %v118
    %2217 = vmatprep.subr.mxu0 0.0
    %2218 = vmatpush1.msra.mxu0 %v119
    %2219 = vmatprep.subr.mxu0 0.0
    %2220 = vmatpush1.msra.mxu0 %v120
    %2221 = vmatprep.subr.mxu0 0.0
    %2222 = vmatpush1.msra.mxu0 %v121
    %2223 = vmatprep.subr.mxu0 0.0
    %2224 = vmatpush1.msra.mxu0 0.0
    %2225 = vmatprep.subr.mxu0 0.0
    %2226 = vmatpush1.msra.mxu0 0.0
    %2227 = vmatprep.subr.mxu0 0.0
    %2228 = vmatpush1.msra.mxu0 0.0
    %2229 = vmatprep.subr.mxu0 0.0
    %2230 = vmatpush1.msra.mxu0 0.0
    %2231 = vmatprep.subr.mxu0 0.0
    %2232 = vmatpush1.msra.mxu0 0.0
    %2233 = vmatprep.subr.mxu0 0.0
    %2234 = vmatpush1.msra.mxu0 0.0
    %2235 = vmatprep.subr.mxu0 0.0
    %2236 = vmatpush1.msra.mxu0 0.0
    %2237 = vmatprep.subr.mxu0 0.0
    %2238 = vmatpush1.msra.mxu0 0.0
    %2239 = vmatprep.subr.mxu0 0.0
    %2240 = vmatpush1.msra.mxu0 0.0
    %2241 = vmatprep.subr.mxu0 0.0
    %2242 = vmatpush1.msra.mxu0 0.0
    %2243 = vmatprep.subr.mxu0 0.0
    %2244 = vmatpush1.msra.mxu0 0.0
    %2245 = vmatprep.subr.mxu0 0.0
    %2246 = vmatpush1.msra.mxu0 0.0
    %2247 = vmatprep.subr.mxu0 0.0
    %2248 = vmatpush1.msra.mxu0 0.0
    %2249 = vmatprep.subr.mxu0 0.0
    %2250 = vmatpush1.msra.mxu0 0.0
    %2251 = vmatprep.subr.mxu0 0.0
    %2252 = vmatpush1.msra.mxu0 0.0
    %2253 = vmatprep.subr.mxu0 0.0
    %2254 = vmatpush1.msra.mxu0 0.0
    %2255 = vmatprep.subr.mxu0 0.0
    %2256 = vmatpush1.msra.mxu0 0.0
    %2257 = vmatprep.subr.mxu0 0.0
    %2258 = vmatpush1.msra.mxu0 0.0
    %2259 = vmatprep.subr.mxu0 0.0
    %2260 = vmatpush1.msra.mxu0 0.0
    %2261 = vmatprep.subr.mxu0 0.0
    %2262 = vmatpush1.msra.mxu0 0.0
    %2263 = vmatprep.subr.mxu0 0.0
    %2264 = vmatpush1.msra.mxu0 0.0
    %2265 = vmatprep.subr.mxu0 0.0
    %2266 = vmatpush1.msra.mxu0 0.0
    %2267 = vmatprep.subr.mxu0 0.0
    %2268 = vmatpush1.msra.mxu0 0.0
    %2269 = vmatprep.subr.mxu0 0.0
    %2270 = vmatpush1.msra.mxu0 0.0
    %2271 = vmatprep.subr.mxu0 0.0
    %2272 = vmatpush1.msra.mxu0 0.0
    %2273 = vmatprep.subr.mxu0 0.0
    %2274 = vmatpush1.msra.mxu0 0.0
    %2275 = vmatprep.subr.mxu0 0.0
    %2276 = vmatpush1.msra.mxu0 0.0
    %2277 = vmatprep.subr.mxu0 0.0
    %2278 = vmatpush1.msra.mxu0 0.0
    %2279 = vmatprep.mubr.f32.mxu0 0.0
    %2280 = vmatmul.mubr.f32.gmra.mrb[0].mxu0 %v2213
    %v2281 = vpop.f32.mrb[0].mxu0
    %v2282 = vadd.f32 %v133, %v2281
    %v2283 = vpop.f32.mrb[0].mxu0
    %2284 = vdwg.mxu0
    %2286 = vrot.lane.b32.xlu0 %v2107, 96
    %v2287 = vpop.permute.xlu0 %2286
    %v2288 = vsel %vm138, %v2287, 0
    %2290 = vmatprep.subr.mxu0 0.0
    %2291 = vmatpush1.msra.mxu0 %v127
    %2292 = vmatprep.subr.mxu0 0.0
    %2293 = vmatpush1.msra.mxu0 %v128
    %2294 = vmatprep.subr.mxu0 0.0
    %2295 = vmatpush1.msra.mxu0 %v129
    %2296 = vmatprep.subr.mxu0 0.0
    %2297 = vmatpush1.msra.mxu0 %v130
    %2298 = vmatprep.subr.mxu0 0.0
    %2299 = vmatpush1.msra.mxu0 0.0
    %2300 = vmatprep.subr.mxu0 0.0
    %2301 = vmatpush1.msra.mxu0 0.0
    %2302 = vmatprep.subr.mxu0 0.0
    %2303 = vmatpush1.msra.mxu0 0.0
    %2304 = vmatprep.subr.mxu0 0.0
    %2305 = vmatpush1.msra.mxu0 0.0
    %2306 = vmatprep.subr.mxu0 0.0
    %2307 = vmatpush1.msra.mxu0 0.0
    %2308 = vmatprep.subr.mxu0 0.0
    %2309 = vmatpush1.msra.mxu0 0.0
    %2310 = vmatprep.subr.mxu0 0.0
    %2311 = vmatpush1.msra.mxu0 0.0
    %2312 = vmatprep.subr.mxu0 0.0
    %2313 = vmatpush1.msra.mxu0 0.0
    %2314 = vmatprep.subr.mxu0 0.0
    %2315 = vmatpush1.msra.mxu0 0.0
    %2316 = vmatprep.subr.mxu0 0.0
    %2317 = vmatpush1.msra.mxu0 0.0
    %2318 = vmatprep.subr.mxu0 0.0
    %2319 = vmatpush1.msra.mxu0 0.0
    %2320 = vmatprep.subr.mxu0 0.0
    %2321 = vmatpush1.msra.mxu0 0.0
    %2322 = vmatprep.subr.mxu0 0.0
    %2323 = vmatpush1.msra.mxu0 0.0
    %2324 = vmatprep.subr.mxu0 0.0
    %2325 = vmatpush1.msra.mxu0 0.0
    %2326 = vmatprep.subr.mxu0 0.0
    %2327 = vmatpush1.msra.mxu0 0.0
    %2328 = vmatprep.subr.mxu0 0.0
    %2329 = vmatpush1.msra.mxu0 0.0
    %2330 = vmatprep.subr.mxu0 0.0
    %2331 = vmatpush1.msra.mxu0 0.0
    %2332 = vmatprep.subr.mxu0 0.0
    %2333 = vmatpush1.msra.mxu0 0.0
    %2334 = vmatprep.subr.mxu0 0.0
    %2335 = vmatpush1.msra.mxu0 0.0
    %2336 = vmatprep.subr.mxu0 0.0
    %2337 = vmatpush1.msra.mxu0 0.0
    %2338 = vmatprep.subr.mxu0 0.0
    %2339 = vmatpush1.msra.mxu0 0.0
    %2340 = vmatprep.subr.mxu0 0.0
    %2341 = vmatpush1.msra.mxu0 0.0
    %2342 = vmatprep.subr.mxu0 0.0
    %2343 = vmatpush1.msra.mxu0 0.0
    %2344 = vmatprep.subr.mxu0 0.0
    %2345 = vmatpush1.msra.mxu0 0.0
    %2346 = vmatprep.subr.mxu0 0.0
    %2347 = vmatpush1.msra.mxu0 0.0
    %2348 = vmatprep.subr.mxu0 0.0
    %2349 = vmatpush1.msra.mxu0 0.0
    %2350 = vmatprep.subr.mxu0 0.0
    %2351 = vmatpush1.msra.mxu0 0.0
    %2352 = vmatprep.subr.mxu0 0.0
    %2353 = vmatpush1.msra.mxu0 0.0
    %2354 = vmatprep.mubr.f32.mxu0 0.0
    %2355 = vmatmul.mubr.f32.gmra.mrb[0].mxu0 %v2288
    %v2356 = vpop.f32.mrb[0].mxu0
    %v2357 = vadd.f32 %v384, %v2356
    %v2358 = vpop.f32.mrb[0].mxu0
    %2359 = vdwg.mxu0
    %v2360 = vadd.f32 %v2282, %v2357
    %v2361 = vxor.u32 %v2360, 2147483648
    %v2362 = vmul.f32 %v2361, 1.442695
    %v2363 = vpow.pop %v2362
    %v2364 = vadd.f32 %v2363, 1.0
    %v2365 = vrcp.pop %v2364
    %v2366 = vmul.f32 1.0, %v2365
    %2367 = vrot.lane.b32.xlu0 %v2366, 64
    %v2368 = vpop.permute.xlu0 %2367
    %v2369 = vmul.f32 %v2368, %v2357
    %v2370 = vadd.f32 %v2282, %v2369
    %v2371 = vtanh.pop %v2370
    %v2372 = vsub.f32 1.0, %v2366
    %2374 = vrot.lane.b32.xlu0 %v2371, 96
    %v2375 = vpop.permute.xlu0 %2374
    %v2377 = vmul.f32 %v2372, %v2375
    %v2378 = vmul.f32 %v2366, %v2107
    %v2379 = vadd.f32 %v2377, %v2378
    %v2380 = vrot.slane %v747, 7
    %v2382 = vrot.slane %v1019, 6
    %v2384 = vrot.slane %v1291, 5
    %v2386 = vrot.slane %v1563, 4
    %v2388 = vrot.slane %v1835, 3
    %v2390 = vrot.slane %v2107, 2
    %v2393 = vrot.slane %v2379, 1
    %v2395 = vsel %vm99, %v475, %v2380
    %v2396 = vsel %vm101, %v2395, %v2382
    %v2397 = vsel %vm103, %v2396, %v2384
    %v2398 = vsel %vm105, %v2397, %v2386
    %v2399 = vsel %vm107, %v2398, %v2388
    %v2400 = vsel %vm109, %v2399, %v2390
    %v2401 = vsel %vm111, %v2400, %v2393
    %v2402 = vld [vmem:[%s5] sm:$0xff]
    %v2403 = vld [vmem:[%s5 + $0x8] sm:$0xff]
    %v2404 = vld [vmem:[%s5 + $0x10] sm:$0xff]
    %v2405 = vld [vmem:[%s5 + $0x18] sm:$0xff]
    %v2406 = vld [vmem:[%s6] sm:$0x1]
    %v2408 = vlaneseq
    %v2409 = vshrl.u32 %v2408, 7
    %v2410 = vsub.s32 0, %v2409
    %v2411 = vrot.slane %v2406, %v2410
    %2414 = vrot.lane.b32.xlu0 %v2401, 96
    %v2415 = vpop.permute.xlu0 %2414
    %v2416 = vsel %vm138, %v2415, 0
    %2418 = vmatprep.subr.mxu0 0.0
    %2419 = vmatpush1.msra.mxu0 %v2402
    %2420 = vmatprep.subr.mxu0 0.0
    %2421 = vmatpush1.msra.mxu0 %v2403
    %2422 = vmatprep.subr.mxu0 0.0
    %2423 = vmatpush1.msra.mxu0 %v2404
    %2424 = vmatprep.subr.mxu0 0.0
    %2425 = vmatpush1.msra.mxu0 %v2405
    %2426 = vmatprep.subr.mxu0 0.0
    %2427 = vmatpush1.msra.mxu0 0.0
    %2428 = vmatprep.subr.mxu0 0.0
    %2429 = vmatpush1.msra.mxu0 0.0
    %2430 = vmatprep.subr.mxu0 0.0
    %2431 = vmatpush1.msra.mxu0 0.0
    %2432 = vmatprep.subr.mxu0 0.0
    %2433 = vmatpush1.msra.mxu0 0.0
    %2434 = vmatprep.subr.mxu0 0.0
    %2435 = vmatpush1.msra.mxu0 0.0
    %2436 = vmatprep.subr.mxu0 0.0
    %2437 = vmatpush1.msra.mxu0 0.0
    %2438 = vmatprep.subr.mxu0 0.0
    %2439 = vmatpush1.msra.mxu0 0.0
    %2440 = vmatprep.subr.mxu0 0.0
    %2441 = vmatpush1.msra.mxu0 0.0
    %2442 = vmatprep.subr.mxu0 0.0
    %2443 = vmatpush1.msra.mxu0 0.0
    %2444 = vmatprep.subr.mxu0 0.0
    %2445 = vmatpush1.msra.mxu0 0.0
    %2446 = vmatprep.subr.mxu0 0.0
    %2447 = vmatpush1.msra.mxu0 0.0
    %2448 = vmatprep.subr.mxu0 0.0
    %2449 = vmatpush1.msra.mxu0 0.0
    %2450 = vmatprep.subr.mxu0 0.0
    %2451 = vmatpush1.msra.mxu0 0.0
    %2452 = vmatprep.subr.mxu0 0.0
    %2453 = vmatpush1.msra.mxu0 0.0
    %2454 = vmatprep.subr.mxu0 0.0
    %2455 = vmatpush1.msra.mxu0 0.0
    %2456 = vmatprep.subr.mxu0 0.0
    %2457 = vmatpush1.msra.mxu0 0.0
    %2458 = vmatprep.subr.mxu0 0.0
    %2459 = vmatpush1.msra.mxu0 0.0
    %2460 = vmatprep.subr.mxu0 0.0
    %2461 = vmatpush1.msra.mxu0 0.0
    %2462 = vmatprep.subr.mxu0 0.0
    %2463 = vmatpush1.msra.mxu0 0.0
    %2464 = vmatprep.subr.mxu0 0.0
    %2465 = vmatpush1.msra.mxu0 0.0
    %2466 = vmatprep.subr.mxu0 0.0
    %2467 = vmatpush1.msra.mxu0 0.0
    %2468 = vmatprep.subr.mxu0 0.0
    %2469 = vmatpush1.msra.mxu0 0.0
    %2470 = vmatprep.subr.mxu0 0.0
    %2471 = vmatpush1.msra.mxu0 0.0
    %2472 = vmatprep.subr.mxu0 0.0
    %2473 = vmatpush1.msra.mxu0 0.0
    %2474 = vmatprep.subr.mxu0 0.0
    %2475 = vmatpush1.msra.mxu0 0.0
    %2476 = vmatprep.subr.mxu0 0.0
    %2477 = vmatpush1.msra.mxu0 0.0
    %2478 = vmatprep.subr.mxu0 0.0
    %2479 = vmatpush1.msra.mxu0 0.0
    %2480 = vmatprep.subr.mxu0 0.0
    %2481 = vmatpush1.msra.mxu0 0.0
    %2482 = vmatprep.mubr.f32.mxu0 0.0
    %2483 = vmatmul.mubr.f32.gmra.mrb[0].mxu0 %v2416
    %v2484 = vpop.f32.mrb[0].mxu0
    %v2485 = vadd.f32 %v2411, %v2484
    %v2486 = vpop.f32.mrb[0].mxu0
    %2487 = vdwg.mxu0
    %2488 = vmax.xlane.f32.xlu0 %v2485
    %v2489 = vpop.xlane.xlu0 %2488
    %v2490 = vsub.f32 %v2485, %v2489
    %v2491 = vmul.f32 %v2490, 1.442695
    %v2492 = vpow.pop %v2491
    %2493 = vadd.xlane.f32.xlu0 %v2492
    %v2494 = vpop.xlane.xlu0 %2493
    %v2495 = vlog2.pop %v2494
    %v2496 = vmul.f32 %v2495, 0.6931472
    %v2497 = vsub.f32 %v2490, %v2496
    %2498 = vst [vmem:[#allocation7] sm:$0xff] %v2497
    // Predicated region
    $region38: #{tpu_custom_call.1} parent=1 // pred_check
      _
    $region39: #{tpu_custom_call.1} parent=1 // pred_check_branch
      %2500 = sbr.rel (0) target = $region41
    $region40: #{tpu_custom_call.1} parent=1 // pred_region
      %s2502 = ssub.s32 128, 128
      %2503 = vsyncadd [#allocation4], %s2502
      %s2505 = sshll.u32 [#allocation7], 4
      %s2506 = int_to_ptr.vmem [resolvable:$true] %s2505
      %2508 = dma.vmem_to_hbm [thread:$0]  %s2506, 128, %s7, [#allocation4]
    $region41: #{tpu_custom_call.1} parent=1 // pred_fallthru
      _
    // Predicated region
    $region42: #{tpu_custom_call.1} parent=1 // pred_check
      _
    $region43: #{tpu_custom_call.1} parent=1 // pred_check_branch
      %2510 = sbr.rel (0) target = $region45
    $region44: #{tpu_custom_call.1} parent=1 // pred_region
      %2511 = dma.done [#allocation4], 128
    $region45: #{tpu_custom_call.1} parent=1 // pred_fallthru
      _
    %2512 = vsyncpa [#allocation3], 1
    %2513 = vsyncpa [#allocation4], 1
    %2514 = vsyncpa [#allocation5], 1

</llo_original>
